<compile_context>
chip_gen: v5e
topology: v5e:2x2
jax: 0.10.0
libtpu: 0.0.40
codegen_flags: <defaults>
</compile_context>

<pallas_src>
import jax
import jax.numpy as jnp
from jax.experimental import pallas as pl
from jax.experimental.pallas import tpu as pltpu

EPS = 1e-5


def _make_kernel(B, CH, H, W):
    """Builds the kernel closure for static (B, CH, H, W)."""
    MID = CH // 2
    S = H * W
    BS = B * S

    def kernel(x_ref, w1_ref, dw_ref, w3_ref,
               g1_ref, b1_ref, g2_ref, b2_ref, g3_ref, b3_ref, out_ref):
        # x_ref: (B, 2*CH, S) VMEM.  Load each batch slab once, lane-concat -> (2*CH, B*S).
        xs = [x_ref[b] for b in range(B)]                                # each (2*CH, S)
        x_all = xs[0] if B == 1 else jnp.concatenate(xs, axis=1)         # (2*CH, BS)

        def batch_norm(a, gamma, beta):
            # Training-mode BatchNorm2d: per-channel stats over (B, H, W), biased variance.
            mu = jnp.mean(a, axis=1, keepdims=True)                      # (C, 1)
            var = jnp.mean((a - mu) ** 2, axis=1, keepdims=True)         # (C, 1)
            scale = gamma * jax.lax.rsqrt(var + EPS)                     # EUP rsqrt
            offset = beta - mu * scale
            return a * scale + offset                                    # one FMA per element

        # ---- firstlayer: 1x1 conv (odd channels folded into zero-padded w1) + BN1 + ReLU ----
        y = jnp.dot(w1_ref[...], x_all,
                    preferred_element_type=jnp.float32,
                    precision=jax.lax.Precision.HIGHEST)                 # (MID, BS)
        y = jnp.maximum(batch_norm(y, g1_ref[...], b1_ref[...]), 0.0)

        # ---- ReflectPad2d(1) + depthwise 3x3 via lane rolls + border masks ----
        lane = jax.lax.broadcasted_iota(jnp.int32, (MID, BS), 1)
        w_idx = lane % W                  # column inside a row
        s_idx = lane % S                  # position inside one image
        left_col = w_idx == 0
        right_col = w_idx == (W - 1)
        top_row = s_idx < W
        bottom_row = s_idx >= (S - W)

        def at_plus(a, d):
            # out[..., i] = a[..., i + d]  (cyclic over BS; wraps are fixed by the masks above)
            return pltpu.roll(a, (-d) % BS, axis=1)

        up = at_plus(y, -W)               # y[h-1, w] in the interior
        down = at_plus(y, W)              # y[h+1, w] in the interior
        rows = (
            jnp.where(top_row, down, up),       # reflect: h = -1  -> h = 1
            y,                                  # h
            jnp.where(bottom_row, up, down),    # reflect: h = H   -> h = H-2
        )

        acc = jnp.zeros_like(y)
        for kh in range(3):
            r = rows[kh]
            l = at_plus(r, -1)            # r[.., w-1] interior
            rr = at_plus(r, 1)            # r[.., w+1] interior
            cols = (
                jnp.where(left_col, rr, l),     # reflect: w = -1 -> w = 1
                r,                              # w
                jnp.where(right_col, l, rr),    # reflect: w = W  -> w = W-2
            )
            for kw in range(3):
                acc = acc + dw_ref[kh * 3 + kw] * cols[kw]               # (MID,1)*(MID,BS)
        z = jnp.maximum(batch_norm(acc, g2_ref[...], b2_ref[...]), 0.0)

        # ---- pointwise: 1x1 conv (MID -> CH) + BN3 (no activation) ----
        o = jnp.dot(w3_ref[...], z,
                    preferred_element_type=jnp.float32,
                    precision=jax.lax.Precision.HIGHEST)                 # (CH, BS)
        o = batch_norm(o, g3_ref[...], b3_ref[...])

        # ---- concat([x_proj, branch], C) : one contiguous lane-dense slab store per batch ----
        for b in range(B):
            x_proj_b = jnp.concatenate(
                [xs[b][2 * c:2 * c + 1] for c in range(CH)], axis=0)     # even channels (CH, S)
            o_b = o[:, b * S:(b + 1) * S]                                # (CH, S), 256-aligned
            out_ref[b] = jnp.concatenate([x_proj_b, o_b], axis=0)        # (2*CH, S)

    return kernel


def shuffle_layer(x, params):
    """x: (B, 2*CH, H, W) float32, NCHW (same convention as the torch module)."""
    w1, dwk, w3, g1, b1, g2, b2, g3, b3 = params
    B, C, H, W = x.shape
    assert C % 4 == 0 and H >= 2 and W >= 2
    CH = C // 2
    MID = CH // 2
    S = H * W

    # Fold shuffle_v2's odd-channel selection into zero-padded 1x1 conv weights (exact).
    w1z = jnp.zeros((MID, C), w1.dtype).at[:, 1::2].set(w1)
    # Depthwise taps reshaped so dw_ref[kh*3+kw] is a (MID, 1) lane-broadcastable column.
    dwk_r = jnp.transpose(dwk).reshape(9, MID, 1)

    x3 = x.reshape(B, C, S)          # free reshape: H*W becomes the lane-dense minor dim

    vmem = pl.BlockSpec(memory_space=pltpu.MemorySpace.VMEM)
    kernel = _make_kernel(B, CH, H, W)

    out = pl.pallas_call(
        kernel,
        out_shape=jax.ShapeDtypeStruct((B, C, S), x.dtype),
        in_specs=[vmem] * 10,
        out_specs=vmem,
    )(x3, w1z, dwk_r, w3,
      g1.reshape(MID, 1), b1.reshape(MID, 1),
      g2.reshape(MID, 1), b2.reshape(MID, 1),
      g3.reshape(CH, 1), b3.reshape(CH, 1))
    return out.reshape(B, C, H, W)


def _reference(x, params):
    """Pure-JAX reference mirroring the torch forward (for validation)."""
    w1, dwk, w3, g1, b1, g2, b2, g3, b3 = params
    B, C, H, W = x.shape
    ch = C // 2
    mid = ch // 2
    x_proj, xm = x[:, 0::2], x[:, 1::2]

    def bn(y, g, b):
        mu = jnp.mean(y, axis=(0, 2, 3), keepdims=True)
        var = jnp.mean((y - mu) ** 2, axis=(0, 2, 3), keepdims=True)
        return (g[None, :, None, None] * (y - mu) * jax.lax.rsqrt(var + EPS)
                + b[None, :, None, None])

    y = jnp.einsum('mc,bchw->bmhw', w1, xm)
    y = jax.nn.relu(bn(y, g1, b1))
    yp = jnp.pad(y, ((0, 0), (0, 0), (1, 1), (1, 1)), mode='reflect')
    z = jax.lax.conv_general_dilated(
        yp, dwk.reshape(mid, 1, 3, 3), window_strides=(1, 1), padding='VALID',
        dimension_numbers=('NCHW', 'OIHW', 'NCHW'), feature_group_count=mid)
    z = jax.nn.relu(bn(z, g2, b2))
    o = bn(jnp.einsum('om,bmhw->bohw', w3, z), g3, b3)
    return jnp.concatenate([x_proj, o], axis=1)


if __name__ == "__main__":
    # ShuffleLayer(channels=4) -> input carries 2*4 = 8 channels.
    B, CH, H, W = 2, 4, 16, 16
    MID = CH // 2

    key = jax.random.PRNGKey(0)
    kx, k1, k2, k3 = jax.random.split(key, 4)
    x = jax.random.normal(kx, (B, 2 * CH, H, W), jnp.float32)

    # Deterministic synthetic weights (torch shapes: (MID,CH,1,1), (MID,1,3,3), (CH,MID,1,1)).
    w1 = jax.random.normal(k1, (MID, CH), jnp.float32) * 0.5
    dwk = jax.random.normal(k2, (MID, 9), jnp.float32) * 0.5
    w3 = jax.random.normal(k3, (CH, MID), jnp.float32) * 0.5
    # BatchNorm affine params (torch default init: gamma=1, beta=0).
    g1 = jnp.ones((MID,), jnp.float32); b1 = jnp.zeros((MID,), jnp.float32)
    g2 = jnp.ones((MID,), jnp.float32); b2 = jnp.zeros((MID,), jnp.float32)
    g3 = jnp.ones((CH,), jnp.float32); b3 = jnp.zeros((CH,), jnp.float32)
    params = (w1, dwk, w3, g1, b1, g2, b2, g3, b3)

    out = jax.block_until_ready(shuffle_layer(x, params))
    assert out.shape == (B, 2 * CH, H, W) and out.dtype == jnp.float32

    ref = _reference(x, params)
    max_err = float(jnp.max(jnp.abs(out - ref)))
    assert jnp.allclose(out, ref, rtol=1e-4, atol=1e-4), f"max abs err {max_err}"

    print("KERNEL_OK")
</pallas_src>

<mosaic_0001>
module attributes {stable_mosaic.version = 11 : i64} {
  func.func @kernel(%arg0: memref<2x8x256xf32, #tpu.memory_space<vmem>>, %arg1: memref<2x8xf32, #tpu.memory_space<vmem>>, %arg2: memref<9x2x1xf32, #tpu.memory_space<vmem>>, %arg3: memref<4x2xf32, #tpu.memory_space<vmem>>, %arg4: memref<2x1xf32, #tpu.memory_space<vmem>>, %arg5: memref<2x1xf32, #tpu.memory_space<vmem>>, %arg6: memref<2x1xf32, #tpu.memory_space<vmem>>, %arg7: memref<2x1xf32, #tpu.memory_space<vmem>>, %arg8: memref<4x1xf32, #tpu.memory_space<vmem>>, %arg9: memref<4x1xf32, #tpu.memory_space<vmem>>, %arg10: memref<2x8x256xf32, #tpu.memory_space<vmem>>) attributes {dimension_semantics = [], scalar_prefetch = 0 : i64, scratch_operands = 0 : i64, tpu.core_type = #tpu.core_type<tc>} {
    %c0 = arith.constant 0 : index
    %c0_0 = arith.constant 0 : index
    %c0_1 = arith.constant 0 : index
    %0 = vector.load %arg0[%c0, %c0_0, %c0_1] : memref<2x8x256xf32, #tpu.memory_space<vmem>>, vector<1x8x256xf32>
    %1 = vector.shape_cast %0 : vector<1x8x256xf32> to vector<8x256xf32>
    %c1 = arith.constant 1 : index
    %c0_2 = arith.constant 0 : index
    %c0_3 = arith.constant 0 : index
    %2 = vector.load %arg0[%c1, %c0_2, %c0_3] : memref<2x8x256xf32, #tpu.memory_space<vmem>>, vector<1x8x256xf32>
    %3 = vector.shape_cast %2 : vector<1x8x256xf32> to vector<8x256xf32>
    %4 = tpu.concatenate %1, %3 in 1 : vector<8x256xf32>, vector<8x256xf32> -> vector<8x512xf32>
    %c0_4 = arith.constant 0 : index
    %c0_5 = arith.constant 0 : index
    %5 = vector.load %arg1[%c0_4, %c0_5] : memref<2x8xf32, #tpu.memory_space<vmem>>, vector<2x8xf32>
    %cst = arith.constant dense<0.000000e+00> : vector<2x512xf32>
    %6 = tpu.matmul %5, %4, %cst {dimension_numbers = #tpu.dot_dimension_numbers<[1], [0], [0], [1], [0, 0, 1, 1], [], []>, precision = #tpu.contract_precision<fp32>} : vector<2x8xf32>, vector<8x512xf32>, vector<2x512xf32> -> vector<2x512xf32>
    %c0_6 = arith.constant 0 : index
    %c0_7 = arith.constant 0 : index
    %7 = vector.load %arg4[%c0_6, %c0_7] : memref<2x1xf32, #tpu.memory_space<vmem>>, vector<2x1xf32>
    %c0_8 = arith.constant 0 : index
    %c0_9 = arith.constant 0 : index
    %8 = vector.load %arg5[%c0_8, %c0_9] : memref<2x1xf32, #tpu.memory_space<vmem>>, vector<2x1xf32>
    %cst_10 = arith.constant dense<0.000000e+00> : vector<2xf32>
    %9 = vector.multi_reduction <add>, %6, %cst_10 [1] : vector<2x512xf32> to vector<2xf32>
    %10 = vector.shape_cast %9 : vector<2xf32> to vector<2x1xf32>
    %cst_11 = arith.constant 5.120000e+02 : f32
    %11 = vector.broadcast %cst_11 : f32 to vector<2x1xf32>
    %12 = arith.divf %10, %11 : vector<2x1xf32>
    %13 = vector.broadcast %12 : vector<2x1xf32> to vector<2x512xf32>
    %14 = arith.subf %6, %13 : vector<2x512xf32>
    %15 = arith.mulf %14, %14 : vector<2x512xf32>
    %cst_12 = arith.constant dense<0.000000e+00> : vector<2xf32>
    %16 = vector.multi_reduction <add>, %15, %cst_12 [1] : vector<2x512xf32> to vector<2xf32>
    %17 = vector.shape_cast %16 : vector<2xf32> to vector<2x1xf32>
    %cst_13 = arith.constant 5.120000e+02 : f32
    %18 = vector.broadcast %cst_13 : f32 to vector<2x1xf32>
    %19 = arith.divf %17, %18 : vector<2x1xf32>
    %cst_14 = arith.constant 9.99999974E-6 : f32
    %20 = vector.broadcast %cst_14 : f32 to vector<2x1xf32>
    %21 = arith.addf %19, %20 : vector<2x1xf32>
    %22 = math.rsqrt %21 : vector<2x1xf32>
    %23 = arith.mulf %7, %22 : vector<2x1xf32>
    %24 = arith.mulf %12, %23 : vector<2x1xf32>
    %25 = arith.subf %8, %24 : vector<2x1xf32>
    %26 = vector.broadcast %23 : vector<2x1xf32> to vector<2x512xf32>
    %27 = arith.mulf %6, %26 : vector<2x512xf32>
    %28 = vector.broadcast %25 : vector<2x1xf32> to vector<2x512xf32>
    %29 = arith.addf %27, %28 : vector<2x512xf32>
    %cst_15 = arith.constant 0.000000e+00 : f32
    %30 = vector.broadcast %cst_15 : f32 to vector<2x512xf32>
    %31 = arith.maximumf %29, %30 : vector<2x512xf32>
    %32 = tpu.iota {dimensions = array<i32: 1>} : vector<2x512xi32>
    %c16_i32 = arith.constant 16 : i32
    %c0_i32 = arith.constant 0 : i32
    %33 = arith.cmpi eq, %c16_i32, %c0_i32 : i32
    %c1_i32 = arith.constant 1 : i32
    %34 = arith.select %33, %c1_i32, %c16_i32 : i32
    %35 = vector.broadcast %34 : i32 to vector<2x512xi32>
    %36 = arith.remsi %32, %35 : vector<2x512xi32>
    %c0_i32_16 = arith.constant 0 : i32
    %37 = vector.broadcast %c0_i32_16 : i32 to vector<2x512xi32>
    %38 = arith.cmpi ne, %36, %37 : vector<2x512xi32>
    %c0_i32_17 = arith.constant 0 : i32
    %39 = vector.broadcast %c0_i32_17 : i32 to vector<2x512xi32>
    %40 = arith.cmpi slt, %36, %39 : vector<2x512xi32>
    %c0_i32_18 = arith.constant 0 : i32
    %41 = arith.cmpi slt, %34, %c0_i32_18 : i32
    %42 = vector.broadcast %41 : i1 to vector<2x512xi1>
    %43 = vector.broadcast %42 : vector<2x512xi1> to vector<2x512xi1>
    %44 = arith.xori %40, %43 : vector<2x512xi1>
    %45 = arith.andi %44, %38 : vector<2x512xi1>
    %46 = vector.broadcast %34 : i32 to vector<2x512xi32>
    %47 = arith.addi %36, %46 : vector<2x512xi32>
    %48 = arith.select %45, %47, %36 : vector<2x512xi1>, vector<2x512xi32>
    %c256_i32 = arith.constant 256 : i32
    %c0_i32_19 = arith.constant 0 : i32
    %49 = arith.cmpi eq, %c256_i32, %c0_i32_19 : i32
    %c1_i32_20 = arith.constant 1 : i32
    %50 = arith.select %49, %c1_i32_20, %c256_i32 : i32
    %51 = vector.broadcast %50 : i32 to vector<2x512xi32>
    %52 = arith.remsi %32, %51 : vector<2x512xi32>
    %c0_i32_21 = arith.constant 0 : i32
    %53 = vector.broadcast %c0_i32_21 : i32 to vector<2x512xi32>
    %54 = arith.cmpi ne, %52, %53 : vector<2x512xi32>
    %c0_i32_22 = arith.constant 0 : i32
    %55 = vector.broadcast %c0_i32_22 : i32 to vector<2x512xi32>
    %56 = arith.cmpi slt, %52, %55 : vector<2x512xi32>
    %c0_i32_23 = arith.constant 0 : i32
    %57 = arith.cmpi slt, %50, %c0_i32_23 : i32
    %58 = vector.broadcast %57 : i1 to vector<2x512xi1>
    %59 = vector.broadcast %58 : vector<2x512xi1> to vector<2x512xi1>
    %60 = arith.xori %56, %59 : vector<2x512xi1>
    %61 = arith.andi %60, %54 : vector<2x512xi1>
    %62 = vector.broadcast %50 : i32 to vector<2x512xi32>
    %63 = arith.addi %52, %62 : vector<2x512xi32>
    %64 = arith.select %61, %63, %52 : vector<2x512xi1>, vector<2x512xi32>
    %c0_i32_24 = arith.constant 0 : i32
    %65 = vector.broadcast %c0_i32_24 : i32 to vector<2x512xi32>
    %66 = arith.cmpi eq, %48, %65 : vector<2x512xi32>
    %c15_i32 = arith.constant 15 : i32
    %67 = vector.broadcast %c15_i32 : i32 to vector<2x512xi32>
    %68 = arith.cmpi eq, %48, %67 : vector<2x512xi32>
    %c16_i32_25 = arith.constant 16 : i32
    %69 = vector.broadcast %c16_i32_25 : i32 to vector<2x512xi32>
    %70 = arith.cmpi slt, %64, %69 : vector<2x512xi32>
    %c240_i32 = arith.constant 240 : i32
    %71 = vector.broadcast %c240_i32 : i32 to vector<2x512xi32>
    %72 = arith.cmpi sge, %64, %71 : vector<2x512xi32>
    %c16_i32_26 = arith.constant 16 : i32
    %73 = tpu.dynamic_rotate %31 by %c16_i32_26 dim 1 : vector<2x512xf32>, i32 -> vector<2x512xf32>
    %c496_i32 = arith.constant 496 : i32
    %74 = tpu.dynamic_rotate %31 by %c496_i32 dim 1 : vector<2x512xf32>, i32 -> vector<2x512xf32>
    %75 = arith.select %70, %74, %73 : vector<2x512xi1>, vector<2x512xf32>
    %76 = arith.select %72, %73, %74 : vector<2x512xi1>, vector<2x512xf32>
    %cst_27 = arith.constant 0.000000e+00 : f32
    %77 = vector.broadcast %cst_27 : f32 to vector<2x512xf32>
    %c1_i32_28 = arith.constant 1 : i32
    %78 = tpu.dynamic_rotate %75 by %c1_i32_28 dim 1 : vector<2x512xf32>, i32 -> vector<2x512xf32>
    %c511_i32 = arith.constant 511 : i32
    %79 = tpu.dynamic_rotate %75 by %c511_i32 dim 1 : vector<2x512xf32>, i32 -> vector<2x512xf32>
    %80 = arith.select %66, %79, %78 : vector<2x512xi1>, vector<2x512xf32>
    %81 = arith.select %68, %78, %79 : vector<2x512xi1>, vector<2x512xf32>
    %c0_29 = arith.constant 0 : index
    %c0_30 = arith.constant 0 : index
    %c0_31 = arith.constant 0 : index
    %82 = vector.load %arg2[%c0_29, %c0_30, %c0_31] : memref<9x2x1xf32, #tpu.memory_space<vmem>>, vector<1x2x1xf32>
    %83 = vector.shape_cast %82 : vector<1x2x1xf32> to vector<2x1xf32>
    %84 = vector.broadcast %83 : vector<2x1xf32> to vector<2x512xf32>
    %85 = arith.mulf %84, %80 : vector<2x512xf32>
    %86 = arith.addf %77, %85 : vector<2x512xf32>
    %c1_32 = arith.constant 1 : index
    %c0_33 = arith.constant 0 : index
    %c0_34 = arith.constant 0 : index
    %87 = vector.load %arg2[%c1_32, %c0_33, %c0_34] : memref<9x2x1xf32, #tpu.memory_space<vmem>>, vector<1x2x1xf32>
    %88 = vector.shape_cast %87 : vector<1x2x1xf32> to vector<2x1xf32>
    %89 = vector.broadcast %88 : vector<2x1xf32> to vector<2x512xf32>
    %90 = arith.mulf %89, %75 : vector<2x512xf32>
    %91 = arith.addf %86, %90 : vector<2x512xf32>
    %c2 = arith.constant 2 : index
    %c0_35 = arith.constant 0 : index
    %c0_36 = arith.constant 0 : index
    %92 = vector.load %arg2[%c2, %c0_35, %c0_36] : memref<9x2x1xf32, #tpu.memory_space<vmem>>, vector<1x2x1xf32>
    %93 = vector.shape_cast %92 : vector<1x2x1xf32> to vector<2x1xf32>
    %94 = vector.broadcast %93 : vector<2x1xf32> to vector<2x512xf32>
    %95 = arith.mulf %94, %81 : vector<2x512xf32>
    %96 = arith.addf %91, %95 : vector<2x512xf32>
    %c1_i32_37 = arith.constant 1 : i32
    %97 = tpu.dynamic_rotate %31 by %c1_i32_37 dim 1 : vector<2x512xf32>, i32 -> vector<2x512xf32>
    %c511_i32_38 = arith.constant 511 : i32
    %98 = tpu.dynamic_rotate %31 by %c511_i32_38 dim 1 : vector<2x512xf32>, i32 -> vector<2x512xf32>
    %99 = arith.select %66, %98, %97 : vector<2x512xi1>, vector<2x512xf32>
    %100 = arith.select %68, %97, %98 : vector<2x512xi1>, vector<2x512xf32>
    %c3 = arith.constant 3 : index
    %c0_39 = arith.constant 0 : index
    %c0_40 = arith.constant 0 : index
    %101 = vector.load %arg2[%c3, %c0_39, %c0_40] : memref<9x2x1xf32, #tpu.memory_space<vmem>>, vector<1x2x1xf32>
    %102 = vector.shape_cast %101 : vector<1x2x1xf32> to vector<2x1xf32>
    %103 = vector.broadcast %102 : vector<2x1xf32> to vector<2x512xf32>
    %104 = arith.mulf %103, %99 : vector<2x512xf32>
    %105 = arith.addf %96, %104 : vector<2x512xf32>
    %c4 = arith.constant 4 : index
    %c0_41 = arith.constant 0 : index
    %c0_42 = arith.constant 0 : index
    %106 = vector.load %arg2[%c4, %c0_41, %c0_42] : memref<9x2x1xf32, #tpu.memory_space<vmem>>, vector<1x2x1xf32>
    %107 = vector.shape_cast %106 : vector<1x2x1xf32> to vector<2x1xf32>
    %108 = vector.broadcast %107 : vector<2x1xf32> to vector<2x512xf32>
    %109 = arith.mulf %108, %31 : vector<2x512xf32>
    %110 = arith.addf %105, %109 : vector<2x512xf32>
    %c5 = arith.constant 5 : index
    %c0_43 = arith.constant 0 : index
    %c0_44 = arith.constant 0 : index
    %111 = vector.load %arg2[%c5, %c0_43, %c0_44] : memref<9x2x1xf32, #tpu.memory_space<vmem>>, vector<1x2x1xf32>
    %112 = vector.shape_cast %111 : vector<1x2x1xf32> to vector<2x1xf32>
    %113 = vector.broadcast %112 : vector<2x1xf32> to vector<2x512xf32>
    %114 = arith.mulf %113, %100 : vector<2x512xf32>
    %115 = arith.addf %110, %114 : vector<2x512xf32>
    %c1_i32_45 = arith.constant 1 : i32
    %116 = tpu.dynamic_rotate %76 by %c1_i32_45 dim 1 : vector<2x512xf32>, i32 -> vector<2x512xf32>
    %c511_i32_46 = arith.constant 511 : i32
    %117 = tpu.dynamic_rotate %76 by %c511_i32_46 dim 1 : vector<2x512xf32>, i32 -> vector<2x512xf32>
    %118 = arith.select %66, %117, %116 : vector<2x512xi1>, vector<2x512xf32>
    %119 = arith.select %68, %116, %117 : vector<2x512xi1>, vector<2x512xf32>
    %c6 = arith.constant 6 : index
    %c0_47 = arith.constant 0 : index
    %c0_48 = arith.constant 0 : index
    %120 = vector.load %arg2[%c6, %c0_47, %c0_48] : memref<9x2x1xf32, #tpu.memory_space<vmem>>, vector<1x2x1xf32>
    %121 = vector.shape_cast %120 : vector<1x2x1xf32> to vector<2x1xf32>
    %122 = vector.broadcast %121 : vector<2x1xf32> to vector<2x512xf32>
    %123 = arith.mulf %122, %118 : vector<2x512xf32>
    %124 = arith.addf %115, %123 : vector<2x512xf32>
    %c7 = arith.constant 7 : index
    %c0_49 = arith.constant 0 : index
    %c0_50 = arith.constant 0 : index
    %125 = vector.load %arg2[%c7, %c0_49, %c0_50] : memref<9x2x1xf32, #tpu.memory_space<vmem>>, vector<1x2x1xf32>
    %126 = vector.shape_cast %125 : vector<1x2x1xf32> to vector<2x1xf32>
    %127 = vector.broadcast %126 : vector<2x1xf32> to vector<2x512xf32>
    %128 = arith.mulf %127, %76 : vector<2x512xf32>
    %129 = arith.addf %124, %128 : vector<2x512xf32>
    %c8 = arith.constant 8 : index
    %c0_51 = arith.constant 0 : index
    %c0_52 = arith.constant 0 : index
    %130 = vector.load %arg2[%c8, %c0_51, %c0_52] : memref<9x2x1xf32, #tpu.memory_space<vmem>>, vector<1x2x1xf32>
    %131 = vector.shape_cast %130 : vector<1x2x1xf32> to vector<2x1xf32>
    %132 = vector.broadcast %131 : vector<2x1xf32> to vector<2x512xf32>
    %133 = arith.mulf %132, %119 : vector<2x512xf32>
    %134 = arith.addf %129, %133 : vector<2x512xf32>
    %c0_53 = arith.constant 0 : index
    %c0_54 = arith.constant 0 : index
    %135 = vector.load %arg6[%c0_53, %c0_54] : memref<2x1xf32, #tpu.memory_space<vmem>>, vector<2x1xf32>
    %c0_55 = arith.constant 0 : index
    %c0_56 = arith.constant 0 : index
    %136 = vector.load %arg7[%c0_55, %c0_56] : memref<2x1xf32, #tpu.memory_space<vmem>>, vector<2x1xf32>
    %cst_57 = arith.constant dense<0.000000e+00> : vector<2xf32>
    %137 = vector.multi_reduction <add>, %134, %cst_57 [1] : vector<2x512xf32> to vector<2xf32>
    %138 = vector.shape_cast %137 : vector<2xf32> to vector<2x1xf32>
    %cst_58 = arith.constant 5.120000e+02 : f32
    %139 = vector.broadcast %cst_58 : f32 to vector<2x1xf32>
    %140 = arith.divf %138, %139 : vector<2x1xf32>
    %141 = vector.broadcast %140 : vector<2x1xf32> to vector<2x512xf32>
    %142 = arith.subf %134, %141 : vector<2x512xf32>
    %143 = arith.mulf %142, %142 : vector<2x512xf32>
    %cst_59 = arith.constant dense<0.000000e+00> : vector<2xf32>
    %144 = vector.multi_reduction <add>, %143, %cst_59 [1] : vector<2x512xf32> to vector<2xf32>
    %145 = vector.shape_cast %144 : vector<2xf32> to vector<2x1xf32>
    %cst_60 = arith.constant 5.120000e+02 : f32
    %146 = vector.broadcast %cst_60 : f32 to vector<2x1xf32>
    %147 = arith.divf %145, %146 : vector<2x1xf32>
    %cst_61 = arith.constant 9.99999974E-6 : f32
    %148 = vector.broadcast %cst_61 : f32 to vector<2x1xf32>
    %149 = arith.addf %147, %148 : vector<2x1xf32>
    %150 = math.rsqrt %149 : vector<2x1xf32>
    %151 = arith.mulf %135, %150 : vector<2x1xf32>
    %152 = arith.mulf %140, %151 : vector<2x1xf32>
    %153 = arith.subf %136, %152 : vector<2x1xf32>
    %154 = vector.broadcast %151 : vector<2x1xf32> to vector<2x512xf32>
    %155 = arith.mulf %134, %154 : vector<2x512xf32>
    %156 = vector.broadcast %153 : vector<2x1xf32> to vector<2x512xf32>
    %157 = arith.addf %155, %156 : vector<2x512xf32>
    %cst_62 = arith.constant 0.000000e+00 : f32
    %158 = vector.broadcast %cst_62 : f32 to vector<2x512xf32>
    %159 = arith.maximumf %157, %158 : vector<2x512xf32>
    %c0_63 = arith.constant 0 : index
    %c0_64 = arith.constant 0 : index
    %160 = vector.load %arg3[%c0_63, %c0_64] : memref<4x2xf32, #tpu.memory_space<vmem>>, vector<4x2xf32>
    %cst_65 = arith.constant dense<0.000000e+00> : vector<4x512xf32>
    %161 = tpu.matmul %160, %159, %cst_65 {dimension_numbers = #tpu.dot_dimension_numbers<[1], [0], [0], [1], [0, 0, 1, 1], [], []>, precision = #tpu.contract_precision<fp32>} : vector<4x2xf32>, vector<2x512xf32>, vector<4x512xf32> -> vector<4x512xf32>
    %c0_66 = arith.constant 0 : index
    %c0_67 = arith.constant 0 : index
    %162 = vector.load %arg8[%c0_66, %c0_67] : memref<4x1xf32, #tpu.memory_space<vmem>>, vector<4x1xf32>
    %c0_68 = arith.constant 0 : index
    %c0_69 = arith.constant 0 : index
    %163 = vector.load %arg9[%c0_68, %c0_69] : memref<4x1xf32, #tpu.memory_space<vmem>>, vector<4x1xf32>
    %cst_70 = arith.constant dense<0.000000e+00> : vector<4xf32>
    %164 = vector.multi_reduction <add>, %161, %cst_70 [1] : vector<4x512xf32> to vector<4xf32>
    %165 = vector.shape_cast %164 : vector<4xf32> to vector<4x1xf32>
    %cst_71 = arith.constant 5.120000e+02 : f32
    %166 = vector.broadcast %cst_71 : f32 to vector<4x1xf32>
    %167 = arith.divf %165, %166 : vector<4x1xf32>
    %168 = vector.broadcast %167 : vector<4x1xf32> to vector<4x512xf32>
    %169 = arith.subf %161, %168 : vector<4x512xf32>
    %170 = arith.mulf %169, %169 : vector<4x512xf32>
    %cst_72 = arith.constant dense<0.000000e+00> : vector<4xf32>
    %171 = vector.multi_reduction <add>, %170, %cst_72 [1] : vector<4x512xf32> to vector<4xf32>
    %172 = vector.shape_cast %171 : vector<4xf32> to vector<4x1xf32>
    %cst_73 = arith.constant 5.120000e+02 : f32
    %173 = vector.broadcast %cst_73 : f32 to vector<4x1xf32>
    %174 = arith.divf %172, %173 : vector<4x1xf32>
    %cst_74 = arith.constant 9.99999974E-6 : f32
    %175 = vector.broadcast %cst_74 : f32 to vector<4x1xf32>
    %176 = arith.addf %174, %175 : vector<4x1xf32>
    %177 = math.rsqrt %176 : vector<4x1xf32>
    %178 = arith.mulf %162, %177 : vector<4x1xf32>
    %179 = arith.mulf %167, %178 : vector<4x1xf32>
    %180 = arith.subf %163, %179 : vector<4x1xf32>
    %181 = vector.broadcast %178 : vector<4x1xf32> to vector<4x512xf32>
    %182 = arith.mulf %161, %181 : vector<4x512xf32>
    %183 = vector.broadcast %180 : vector<4x1xf32> to vector<4x512xf32>
    %184 = arith.addf %182, %183 : vector<4x512xf32>
    %185 = vector.extract_strided_slice %1 {offsets = [0, 0], sizes = [1, 256], strides = [1, 1]} : vector<8x256xf32> to vector<1x256xf32>
    %186 = vector.extract_strided_slice %1 {offsets = [2, 0], sizes = [1, 256], strides = [1, 1]} : vector<8x256xf32> to vector<1x256xf32>
    %187 = vector.extract_strided_slice %1 {offsets = [4, 0], sizes = [1, 256], strides = [1, 1]} : vector<8x256xf32> to vector<1x256xf32>
    %188 = vector.extract_strided_slice %1 {offsets = [6, 0], sizes = [1, 256], strides = [1, 1]} : vector<8x256xf32> to vector<1x256xf32>
    %189 = tpu.concatenate %185, %186, %187, %188 in 0 : vector<1x256xf32>, vector<1x256xf32>, vector<1x256xf32>, vector<1x256xf32> -> vector<4x256xf32>
    %190 = vector.extract_strided_slice %184 {offsets = [0, 0], sizes = [4, 256], strides = [1, 1]} : vector<4x512xf32> to vector<4x256xf32>
    %191 = tpu.concatenate %189, %190 in 0 : vector<4x256xf32>, vector<4x256xf32> -> vector<8x256xf32>
    %c0_75 = arith.constant 0 : index
    %c0_76 = arith.constant 0 : index
    %c0_77 = arith.constant 0 : index
    %192 = vector.load %arg10[%c0_75, %c0_76, %c0_77] : memref<2x8x256xf32, #tpu.memory_space<vmem>>, vector<1x8x256xf32>
    %193 = vector.shape_cast %192 : vector<1x8x256xf32> to vector<8x256xf32>
    %194 = vector.shape_cast %191 : vector<8x256xf32> to vector<1x8x256xf32>
    tpu.vector_store %arg10[%c0_75, %c0_76, %c0_77], %194 {strides = array<i32>} : memref<2x8x256xf32, #tpu.memory_space<vmem>>, vector<1x8x256xf32>,
    %195 = vector.extract_strided_slice %3 {offsets = [0, 0], sizes = [1, 256], strides = [1, 1]} : vector<8x256xf32> to vector<1x256xf32>
    %196 = vector.extract_strided_slice %3 {offsets = [2, 0], sizes = [1, 256], strides = [1, 1]} : vector<8x256xf32> to vector<1x256xf32>
    %197 = vector.extract_strided_slice %3 {offsets = [4, 0], sizes = [1, 256], strides = [1, 1]} : vector<8x256xf32> to vector<1x256xf32>
    %198 = vector.extract_strided_slice %3 {offsets = [6, 0], sizes = [1, 256], strides = [1, 1]} : vector<8x256xf32> to vector<1x256xf32>
    %199 = tpu.concatenate %195, %196, %197, %198 in 0 : vector<1x256xf32>, vector<1x256xf32>, vector<1x256xf32>, vector<1x256xf32> -> vector<4x256xf32>
    %200 = vector.extract_strided_slice %184 {offsets = [0, 256], sizes = [4, 256], strides = [1, 1]} : vector<4x512xf32> to vector<4x256xf32>
    %201 = tpu.concatenate %199, %200 in 0 : vector<4x256xf32>, vector<4x256xf32> -> vector<8x256xf32>
    %c1_78 = arith.constant 1 : index
    %c0_79 = arith.constant 0 : index
    %c0_80 = arith.constant 0 : index
    %202 = vector.load %arg10[%c1_78, %c0_79, %c0_80] : memref<2x8x256xf32, #tpu.memory_space<vmem>>, vector<1x8x256xf32>
    %203 = vector.shape_cast %202 : vector<1x8x256xf32> to vector<8x256xf32>
    %204 = vector.shape_cast %201 : vector<8x256xf32> to vector<1x8x256xf32>
    tpu.vector_store %arg10[%c1_78, %c0_79, %c0_80], %204 {strides = array<i32>} : memref<2x8x256xf32, #tpu.memory_space<vmem>>, vector<1x8x256xf32>,
    return
  }
}

</mosaic_0001>

<llo_original>
// kernel: tpu_custom_call.1
$region0: #{tpu_custom_call.1}
  #allocation0 [shape = 'u32[]', space=smem, size = 0x4, offset = 0x4, fixed_abs, tag = 'smem constant byte address 0x4 - core index']
  #allocation1 [shape = 'u32[72,128]{1,0:T(1,128)}', space=vmem, size = 0x9000, scoped, tag = 'internal scratch']
  %s0 = inlined_call_operand.hbm [shape: f32[2,8,256], index: 0, kind: input, shape index: {}]
  %s1 = inlined_call_operand.vmem [shape: f32[2,8], index: 1, kind: input, shape index: {}]
  %s2 = inlined_call_operand.vmem [shape: f32[9,2,1], index: 2, kind: input, shape index: {}]
  %s3 = inlined_call_operand.vmem [shape: f32[4,2], index: 3, kind: input, shape index: {}]
  %s4 = inlined_call_operand.vmem [shape: f32[2,1], index: 4, kind: input, shape index: {}]
  %s5 = inlined_call_operand.vmem [shape: f32[2,1], index: 5, kind: input, shape index: {}]
  %s6 = inlined_call_operand.vmem [shape: f32[2,1], index: 6, kind: input, shape index: {}]
  %s7 = inlined_call_operand.vmem [shape: f32[2,1], index: 7, kind: input, shape index: {}]
  %s8 = inlined_call_operand.vmem [shape: f32[4,1], index: 8, kind: input, shape index: {}]
  %s9 = inlined_call_operand.vmem [shape: f32[4,1], index: 9, kind: input, shape index: {}]
  %s10 = inlined_call_operand.hbm [shape: f32[2,8,256], index: 10, kind: output, shape index: {}]
  %s11 = sld [smem:[#allocation0]]
  $region54: #{tpu_custom_call.1} parent=0
    _
  %s13 = ssub.s32 1, %s11
  %s14 = scalar_select 0, %s13, %s11
  $region1: #{tpu_custom_call.1} parent=0
    #allocation2 [shape = 'u8[16384]{0}', space=vmem, size = 0x4000, scoped, tag = 'input window, operand 0, single buffered']
    #allocation3 [shape = 's32[1]{0}', space=sflag, size = 0x4, scoped, tag = 'scoped memory for tpu_custom_call.1']
    #allocation4 [shape = 's32[1]{0}', space=sflag, size = 0x4, scoped, tag = 'scoped memory for tpu_custom_call.1']
    #allocation5 [shape = 'u8[16384]{0}', space=vmem, size = 0x4000, scoped, tag = 'output window, operand 0, single buffered']
    %15 = vsyncpa [#allocation3], 0
    %16 = vsyncpa [#allocation4], 0
    // Predicated region
    $region2: #{tpu_custom_call.1} parent=1 // pred_check
      _
    $region3: #{tpu_custom_call.1} parent=1 // pred_check_branch
      %18 = sbr.rel (0) target = $region5
    $region4: #{tpu_custom_call.1} parent=1 // pred_region
      %20 = vsyncadd [#allocation3], 0
      %s21 = sshll.u32 %s0, 4
      %s22 = int_to_ptr.hbm [resolvable:$true] %s21
      %s23 = sshll.u32 [#allocation2], 4
      %s24 = int_to_ptr.vmem [resolvable:$true] %s23
      %29 = dma.hbm_to_vmem [thread:$0]  %s22, 512, %s24, [#allocation3], 256, 256, 16
    $region5: #{tpu_custom_call.1} parent=1 // pred_fallthru
      _
    // Predicated region
    $region6: #{tpu_custom_call.1} parent=1 // pred_check
      _
    $region7: #{tpu_custom_call.1} parent=1 // pred_check_branch
      %31 = sbr.rel (0) target = $region9
    $region8: #{tpu_custom_call.1} parent=1 // pred_region
      _
    $region9: #{tpu_custom_call.1} parent=1 // pred_fallthru
      _
    // Predicated region
    $region10: #{tpu_custom_call.1} parent=1 // pred_check
      _
    $region11: #{tpu_custom_call.1} parent=1 // pred_check_branch
      %33 = sbr.rel (0) target = $region13
    $region12: #{tpu_custom_call.1} parent=1 // pred_region
      _
    $region13: #{tpu_custom_call.1} parent=1 // pred_fallthru
      _
    // Predicated region
    $region14: #{tpu_custom_call.1} parent=1 // pred_check
      _
    $region15: #{tpu_custom_call.1} parent=1 // pred_check_branch
      %35 = sbr.rel (0) target = $region17
    $region16: #{tpu_custom_call.1} parent=1 // pred_region
      _
    $region17: #{tpu_custom_call.1} parent=1 // pred_fallthru
      _
    // Predicated region
    $region18: #{tpu_custom_call.1} parent=1 // pred_check
      _
    $region19: #{tpu_custom_call.1} parent=1 // pred_check_branch
      %37 = sbr.rel (0) target = $region21
    $region20: #{tpu_custom_call.1} parent=1 // pred_region
      _
    $region21: #{tpu_custom_call.1} parent=1 // pred_fallthru
      _
    // Predicated region
    $region22: #{tpu_custom_call.1} parent=1 // pred_check
      _
    $region23: #{tpu_custom_call.1} parent=1 // pred_check_branch
      %39 = sbr.rel (0) target = $region25
    $region24: #{tpu_custom_call.1} parent=1 // pred_region
      _
    $region25: #{tpu_custom_call.1} parent=1 // pred_fallthru
      _
    // Predicated region
    $region26: #{tpu_custom_call.1} parent=1 // pred_check
      _
    $region27: #{tpu_custom_call.1} parent=1 // pred_check_branch
      %41 = sbr.rel (0) target = $region29
    $region28: #{tpu_custom_call.1} parent=1 // pred_region
      _
    $region29: #{tpu_custom_call.1} parent=1 // pred_fallthru
      _
    // Predicated region
    $region30: #{tpu_custom_call.1} parent=1 // pred_check
      _
    $region31: #{tpu_custom_call.1} parent=1 // pred_check_branch
      %43 = sbr.rel (0) target = $region33
    $region32: #{tpu_custom_call.1} parent=1 // pred_region
      _
    $region33: #{tpu_custom_call.1} parent=1 // pred_fallthru
      _
    // Predicated region
    $region34: #{tpu_custom_call.1} parent=1 // pred_check
      _
    $region35: #{tpu_custom_call.1} parent=1 // pred_check_branch
      %45 = sbr.rel (0) target = $region37
    $region36: #{tpu_custom_call.1} parent=1 // pred_region
      _
    $region37: #{tpu_custom_call.1} parent=1 // pred_fallthru
      _
    // Predicated region
    $region38: #{tpu_custom_call.1} parent=1 // pred_check
      _
    $region39: #{tpu_custom_call.1} parent=1 // pred_check_branch
      %47 = sbr.rel (0) target = $region41
    $region40: #{tpu_custom_call.1} parent=1 // pred_region
      _
    $region41: #{tpu_custom_call.1} parent=1 // pred_fallthru
      _
    // Predicated region
    $region42: #{tpu_custom_call.1} parent=1 // pred_check
      _
    $region43: #{tpu_custom_call.1} parent=1 // pred_check_branch
      %49 = sbr.rel (0) target = $region45
    $region44: #{tpu_custom_call.1} parent=1 // pred_region
      %51 = dma.done [#allocation3], 512
    $region45: #{tpu_custom_call.1} parent=1 // pred_fallthru
      _
    %v52 = vld [vmem:[#allocation2] sm:$0xff]
    %v53 = vld [vmem:[#allocation2 + $0x8] sm:$0xff]
    %s54 = scalar_lea.vmem [#allocation2], 16
    %v55 = vld [vmem:[%s54] sm:$0xff]
    %v56 = vld [vmem:[%s54 + $0x8] sm:$0xff]
    %v57 = vld [vmem:[%s1] sm:$0x3]
    %vm58 = vcmask 64512
    %v60 = vsel %vm58, %v57, 0
    %62 = vmatpush.msra.mxu0 0.0
    %63 = vmatpush.msra.mxu0 0.0
    %64 = vmatpush.msra.mxu0 0.0
    %65 = vmatpush.msra.mxu0 0.0
    %66 = vmatpush.msra.mxu0 0.0
    %67 = vmatpush.msra.mxu0 0.0
    %68 = vmatpush.msra.mxu0 0.0
    %69 = vmatpush.msra.mxu0 0.0
    %70 = vmatpush.msra.mxu0 0.0
    %71 = vmatpush.msra.mxu0 0.0
    %72 = vmatpush.msra.mxu0 0.0
    %73 = vmatpush.msra.mxu0 0.0
    %74 = vmatpush.msra.mxu0 0.0
    %75 = vmatpush.msra.mxu0 0.0
    %76 = vmatpush.msra.mxu0 0.0
    %v77 = vand.u32 %v52, 4294901760
    %78 = vmatpush.msra.mxu0 %v77
    %v79 = vand.u32 %v60, 4294901760
    %v80 = vsub.f32 %v60, %v79
    %v81 = vand.u32 %v80, 4294901760
    %v82 = vsub.f32 %v80, %v81
    %v83 = vand.u32 %v82, 4294901760
    %84 = vmatmul.f32.gmra.mxu0 %v83
    %v85 = vpop.f32.mrf.mxu0
    %v86 = vadd.f32 0.0, %v85
    %87 = vdwg.mxu0
    %88 = vmatpush.msra.mxu0 0.0
    %89 = vmatpush.msra.mxu0 0.0
    %90 = vmatpush.msra.mxu0 0.0
    %91 = vmatpush.msra.mxu0 0.0
    %92 = vmatpush.msra.mxu0 0.0
    %93 = vmatpush.msra.mxu0 0.0
    %94 = vmatpush.msra.mxu0 0.0
    %95 = vmatpush.msra.mxu0 0.0
    %96 = vmatpush.msra.mxu0 0.0
    %97 = vmatpush.msra.mxu0 0.0
    %98 = vmatpush.msra.mxu0 0.0
    %99 = vmatpush.msra.mxu0 0.0
    %100 = vmatpush.msra.mxu0 0.0
    %101 = vmatpush.msra.mxu0 0.0
    %102 = vmatpush.msra.mxu0 0.0
    %v103 = vand.u32 %v52, 4294901760
    %v104 = vsub.f32 %v52, %v103
    %v105 = vand.u32 %v104, 4294901760
    %v106 = vsub.f32 %v104, %v105
    %v107 = vand.u32 %v106, 4294901760
    %108 = vmatpush.msra.mxu0 %v107
    %v109 = vand.u32 %v60, 4294901760
    %110 = vmatmul.f32.gmra.mxu0 %v109
    %v111 = vpop.f32.mrf.mxu0
    %v112 = vadd.f32 %v86, %v111
    %113 = vdwg.mxu0
    %114 = vmatpush.msra.mxu0 0.0
    %115 = vmatpush.msra.mxu0 0.0
    %116 = vmatpush.msra.mxu0 0.0
    %117 = vmatpush.msra.mxu0 0.0
    %118 = vmatpush.msra.mxu0 0.0
    %119 = vmatpush.msra.mxu0 0.0
    %120 = vmatpush.msra.mxu0 0.0
    %121 = vmatpush.msra.mxu0 0.0
    %122 = vmatpush.msra.mxu0 0.0
    %123 = vmatpush.msra.mxu0 0.0
    %124 = vmatpush.msra.mxu0 0.0
    %125 = vmatpush.msra.mxu0 0.0
    %126 = vmatpush.msra.mxu0 0.0
    %127 = vmatpush.msra.mxu0 0.0
    %128 = vmatpush.msra.mxu0 0.0
    %v129 = vand.u32 %v52, 4294901760
    %v130 = vsub.f32 %v52, %v129
    %131 = vmatpush.msra.mxu0 %v130
    %v132 = vand.u32 %v60, 4294901760
    %v133 = vsub.f32 %v60, %v132
    %134 = vmatmul.f32.gmra.mxu0 %v133
    %v135 = vpop.f32.mrf.mxu0
    %v136 = vadd.f32 %v112, %v135
    %137 = vdwg.mxu0
    %138 = vmatpush.msra.mxu0 0.0
    %139 = vmatpush.msra.mxu0 0.0
    %140 = vmatpush.msra.mxu0 0.0
    %141 = vmatpush.msra.mxu0 0.0
    %142 = vmatpush.msra.mxu0 0.0
    %143 = vmatpush.msra.mxu0 0.0
    %144 = vmatpush.msra.mxu0 0.0
    %145 = vmatpush.msra.mxu0 0.0
    %146 = vmatpush.msra.mxu0 0.0
    %147 = vmatpush.msra.mxu0 0.0
    %148 = vmatpush.msra.mxu0 0.0
    %149 = vmatpush.msra.mxu0 0.0
    %150 = vmatpush.msra.mxu0 0.0
    %151 = vmatpush.msra.mxu0 0.0
    %152 = vmatpush.msra.mxu0 0.0
    %v153 = vand.u32 %v52, 4294901760
    %154 = vmatpush.msra.mxu0 %v153
    %v155 = vand.u32 %v60, 4294901760
    %v156 = vsub.f32 %v60, %v155
    %v157 = vand.u32 %v156, 4294901760
    %158 = vmatmul.f32.gmra.mxu0 %v157
    %v159 = vpop.f32.mrf.mxu0
    %v160 = vadd.f32 %v136, %v159
    %161 = vdwg.mxu0
    %162 = vmatpush.msra.mxu0 0.0
    %163 = vmatpush.msra.mxu0 0.0
    %164 = vmatpush.msra.mxu0 0.0
    %165 = vmatpush.msra.mxu0 0.0
    %166 = vmatpush.msra.mxu0 0.0
    %167 = vmatpush.msra.mxu0 0.0
    %168 = vmatpush.msra.mxu0 0.0
    %169 = vmatpush.msra.mxu0 0.0
    %170 = vmatpush.msra.mxu0 0.0
    %171 = vmatpush.msra.mxu0 0.0
    %172 = vmatpush.msra.mxu0 0.0
    %173 = vmatpush.msra.mxu0 0.0
    %174 = vmatpush.msra.mxu0 0.0
    %175 = vmatpush.msra.mxu0 0.0
    %176 = vmatpush.msra.mxu0 0.0
    %v177 = vand.u32 %v52, 4294901760
    %v178 = vsub.f32 %v52, %v177
    %v179 = vand.u32 %v178, 4294901760
    %180 = vmatpush.msra.mxu0 %v179
    %v181 = vand.u32 %v60, 4294901760
    %182 = vmatmul.f32.gmra.mxu0 %v181
    %v183 = vpop.f32.mrf.mxu0
    %v184 = vadd.f32 %v160, %v183
    %185 = vdwg.mxu0
    %186 = vmatpush.msra.mxu0 0.0
    %187 = vmatpush.msra.mxu0 0.0
    %188 = vmatpush.msra.mxu0 0.0
    %189 = vmatpush.msra.mxu0 0.0
    %190 = vmatpush.msra.mxu0 0.0
    %191 = vmatpush.msra.mxu0 0.0
    %192 = vmatpush.msra.mxu0 0.0
    %193 = vmatpush.msra.mxu0 0.0
    %194 = vmatpush.msra.mxu0 0.0
    %195 = vmatpush.msra.mxu0 0.0
    %196 = vmatpush.msra.mxu0 0.0
    %197 = vmatpush.msra.mxu0 0.0
    %198 = vmatpush.msra.mxu0 0.0
    %199 = vmatpush.msra.mxu0 0.0
    %200 = vmatpush.msra.mxu0 0.0
    %v201 = vand.u32 %v52, 4294901760
    %202 = vmatpush.msra.mxu0 %v201
    %v203 = vand.u32 %v60, 4294901760
    %204 = vmatmul.f32.gmra.mxu0 %v203
    %v205 = vpop.f32.mrf.mxu0
    %v206 = vadd.f32 %v184, %v205
    %207 = vdwg.mxu0
    %208 = vmatpush.msra.mxu0 0.0
    %209 = vmatpush.msra.mxu0 0.0
    %210 = vmatpush.msra.mxu0 0.0
    %211 = vmatpush.msra.mxu0 0.0
    %212 = vmatpush.msra.mxu0 0.0
    %213 = vmatpush.msra.mxu0 0.0
    %214 = vmatpush.msra.mxu0 0.0
    %215 = vmatpush.msra.mxu0 0.0
    %216 = vmatpush.msra.mxu0 0.0
    %217 = vmatpush.msra.mxu0 0.0
    %218 = vmatpush.msra.mxu0 0.0
    %219 = vmatpush.msra.mxu0 0.0
    %220 = vmatpush.msra.mxu0 0.0
    %221 = vmatpush.msra.mxu0 0.0
    %222 = vmatpush.msra.mxu0 0.0
    %v223 = vand.u32 %v53, 4294901760
    %224 = vmatpush.msra.mxu0 %v223
    %v225 = vand.u32 %v60, 4294901760
    %v226 = vsub.f32 %v60, %v225
    %v227 = vand.u32 %v226, 4294901760
    %v228 = vsub.f32 %v226, %v227
    %v229 = vand.u32 %v228, 4294901760
    %230 = vmatmul.f32.gmra.mxu0 %v229
    %v231 = vpop.f32.mrf.mxu0
    %v232 = vadd.f32 0.0, %v231
    %233 = vdwg.mxu0
    %234 = vmatpush.msra.mxu0 0.0
    %235 = vmatpush.msra.mxu0 0.0
    %236 = vmatpush.msra.mxu0 0.0
    %237 = vmatpush.msra.mxu0 0.0
    %238 = vmatpush.msra.mxu0 0.0
    %239 = vmatpush.msra.mxu0 0.0
    %240 = vmatpush.msra.mxu0 0.0
    %241 = vmatpush.msra.mxu0 0.0
    %242 = vmatpush.msra.mxu0 0.0
    %243 = vmatpush.msra.mxu0 0.0
    %244 = vmatpush.msra.mxu0 0.0
    %245 = vmatpush.msra.mxu0 0.0
    %246 = vmatpush.msra.mxu0 0.0
    %247 = vmatpush.msra.mxu0 0.0
    %248 = vmatpush.msra.mxu0 0.0
    %v249 = vand.u32 %v53, 4294901760
    %v250 = vsub.f32 %v53, %v249
    %v251 = vand.u32 %v250, 4294901760
    %v252 = vsub.f32 %v250, %v251
    %v253 = vand.u32 %v252, 4294901760
    %254 = vmatpush.msra.mxu0 %v253
    %v255 = vand.u32 %v60, 4294901760
    %256 = vmatmul.f32.gmra.mxu0 %v255
    %v257 = vpop.f32.mrf.mxu0
    %v258 = vadd.f32 %v232, %v257
    %259 = vdwg.mxu0
    %260 = vmatpush.msra.mxu0 0.0
    %261 = vmatpush.msra.mxu0 0.0
    %262 = vmatpush.msra.mxu0 0.0
    %263 = vmatpush.msra.mxu0 0.0
    %264 = vmatpush.msra.mxu0 0.0
    %265 = vmatpush.msra.mxu0 0.0
    %266 = vmatpush.msra.mxu0 0.0
    %267 = vmatpush.msra.mxu0 0.0
    %268 = vmatpush.msra.mxu0 0.0
    %269 = vmatpush.msra.mxu0 0.0
    %270 = vmatpush.msra.mxu0 0.0
    %271 = vmatpush.msra.mxu0 0.0
    %272 = vmatpush.msra.mxu0 0.0
    %273 = vmatpush.msra.mxu0 0.0
    %274 = vmatpush.msra.mxu0 0.0
    %v275 = vand.u32 %v53, 4294901760
    %v276 = vsub.f32 %v53, %v275
    %277 = vmatpush.msra.mxu0 %v276
    %v278 = vand.u32 %v60, 4294901760
    %v279 = vsub.f32 %v60, %v278
    %280 = vmatmul.f32.gmra.mxu0 %v279
    %v281 = vpop.f32.mrf.mxu0
    %v282 = vadd.f32 %v258, %v281
    %283 = vdwg.mxu0
    %284 = vmatpush.msra.mxu0 0.0
    %285 = vmatpush.msra.mxu0 0.0
    %286 = vmatpush.msra.mxu0 0.0
    %287 = vmatpush.msra.mxu0 0.0
    %288 = vmatpush.msra.mxu0 0.0
    %289 = vmatpush.msra.mxu0 0.0
    %290 = vmatpush.msra.mxu0 0.0
    %291 = vmatpush.msra.mxu0 0.0
    %292 = vmatpush.msra.mxu0 0.0
    %293 = vmatpush.msra.mxu0 0.0
    %294 = vmatpush.msra.mxu0 0.0
    %295 = vmatpush.msra.mxu0 0.0
    %296 = vmatpush.msra.mxu0 0.0
    %297 = vmatpush.msra.mxu0 0.0
    %298 = vmatpush.msra.mxu0 0.0
    %v299 = vand.u32 %v53, 4294901760
    %300 = vmatpush.msra.mxu0 %v299
    %v301 = vand.u32 %v60, 4294901760
    %v302 = vsub.f32 %v60, %v301
    %v303 = vand.u32 %v302, 4294901760
    %304 = vmatmul.f32.gmra.mxu0 %v303
    %v305 = vpop.f32.mrf.mxu0
    %v306 = vadd.f32 %v282, %v305
    %307 = vdwg.mxu0
    %308 = vmatpush.msra.mxu0 0.0
    %309 = vmatpush.msra.mxu0 0.0
    %310 = vmatpush.msra.mxu0 0.0
    %311 = vmatpush.msra.mxu0 0.0
    %312 = vmatpush.msra.mxu0 0.0
    %313 = vmatpush.msra.mxu0 0.0
    %314 = vmatpush.msra.mxu0 0.0
    %315 = vmatpush.msra.mxu0 0.0
    %316 = vmatpush.msra.mxu0 0.0
    %317 = vmatpush.msra.mxu0 0.0
    %318 = vmatpush.msra.mxu0 0.0
    %319 = vmatpush.msra.mxu0 0.0
    %320 = vmatpush.msra.mxu0 0.0
    %321 = vmatpush.msra.mxu0 0.0
    %322 = vmatpush.msra.mxu0 0.0
    %v323 = vand.u32 %v53, 4294901760
    %v324 = vsub.f32 %v53, %v323
    %v325 = vand.u32 %v324, 4294901760
    %326 = vmatpush.msra.mxu0 %v325
    %v327 = vand.u32 %v60, 4294901760
    %328 = vmatmul.f32.gmra.mxu0 %v327
    %v329 = vpop.f32.mrf.mxu0
    %v330 = vadd.f32 %v306, %v329
    %331 = vdwg.mxu0
    %332 = vmatpush.msra.mxu0 0.0
    %333 = vmatpush.msra.mxu0 0.0
    %334 = vmatpush.msra.mxu0 0.0
    %335 = vmatpush.msra.mxu0 0.0
    %336 = vmatpush.msra.mxu0 0.0
    %337 = vmatpush.msra.mxu0 0.0
    %338 = vmatpush.msra.mxu0 0.0
    %339 = vmatpush.msra.mxu0 0.0
    %340 = vmatpush.msra.mxu0 0.0
    %341 = vmatpush.msra.mxu0 0.0
    %342 = vmatpush.msra.mxu0 0.0
    %343 = vmatpush.msra.mxu0 0.0
    %344 = vmatpush.msra.mxu0 0.0
    %345 = vmatpush.msra.mxu0 0.0
    %346 = vmatpush.msra.mxu0 0.0
    %v347 = vand.u32 %v53, 4294901760
    %348 = vmatpush.msra.mxu0 %v347
    %v349 = vand.u32 %v60, 4294901760
    %350 = vmatmul.f32.gmra.mxu0 %v349
    %v351 = vpop.f32.mrf.mxu0
    %v352 = vadd.f32 %v330, %v351
    %353 = vdwg.mxu0
    %354 = vmatpush.msra.mxu0 0.0
    %355 = vmatpush.msra.mxu0 0.0
    %356 = vmatpush.msra.mxu0 0.0
    %357 = vmatpush.msra.mxu0 0.0
    %358 = vmatpush.msra.mxu0 0.0
    %359 = vmatpush.msra.mxu0 0.0
    %360 = vmatpush.msra.mxu0 0.0
    %361 = vmatpush.msra.mxu0 0.0
    %362 = vmatpush.msra.mxu0 0.0
    %363 = vmatpush.msra.mxu0 0.0
    %364 = vmatpush.msra.mxu0 0.0
    %365 = vmatpush.msra.mxu0 0.0
    %366 = vmatpush.msra.mxu0 0.0
    %367 = vmatpush.msra.mxu0 0.0
    %368 = vmatpush.msra.mxu0 0.0
    %v369 = vand.u32 %v55, 4294901760
    %370 = vmatpush.msra.mxu0 %v369
    %v371 = vand.u32 %v60, 4294901760
    %v372 = vsub.f32 %v60, %v371
    %v373 = vand.u32 %v372, 4294901760
    %v374 = vsub.f32 %v372, %v373
    %v375 = vand.u32 %v374, 4294901760
    %376 = vmatmul.f32.gmra.mxu0 %v375
    %v377 = vpop.f32.mrf.mxu0
    %v378 = vadd.f32 0.0, %v377
    %379 = vdwg.mxu0
    %380 = vmatpush.msra.mxu0 0.0
    %381 = vmatpush.msra.mxu0 0.0
    %382 = vmatpush.msra.mxu0 0.0
    %383 = vmatpush.msra.mxu0 0.0
    %384 = vmatpush.msra.mxu0 0.0
    %385 = vmatpush.msra.mxu0 0.0
    %386 = vmatpush.msra.mxu0 0.0
    %387 = vmatpush.msra.mxu0 0.0
    %388 = vmatpush.msra.mxu0 0.0
    %389 = vmatpush.msra.mxu0 0.0
    %390 = vmatpush.msra.mxu0 0.0
    %391 = vmatpush.msra.mxu0 0.0
    %392 = vmatpush.msra.mxu0 0.0
    %393 = vmatpush.msra.mxu0 0.0
    %394 = vmatpush.msra.mxu0 0.0
    %v395 = vand.u32 %v55, 4294901760
    %v396 = vsub.f32 %v55, %v395
    %v397 = vand.u32 %v396, 4294901760
    %v398 = vsub.f32 %v396, %v397
    %v399 = vand.u32 %v398, 4294901760
    %400 = vmatpush.msra.mxu0 %v399
    %v401 = vand.u32 %v60, 4294901760
    %402 = vmatmul.f32.gmra.mxu0 %v401
    %v403 = vpop.f32.mrf.mxu0
    %v404 = vadd.f32 %v378, %v403
    %405 = vdwg.mxu0
    %406 = vmatpush.msra.mxu0 0.0
    %407 = vmatpush.msra.mxu0 0.0
    %408 = vmatpush.msra.mxu0 0.0
    %409 = vmatpush.msra.mxu0 0.0
    %410 = vmatpush.msra.mxu0 0.0
    %411 = vmatpush.msra.mxu0 0.0
    %412 = vmatpush.msra.mxu0 0.0
    %413 = vmatpush.msra.mxu0 0.0
    %414 = vmatpush.msra.mxu0 0.0
    %415 = vmatpush.msra.mxu0 0.0
    %416 = vmatpush.msra.mxu0 0.0
    %417 = vmatpush.msra.mxu0 0.0
    %418 = vmatpush.msra.mxu0 0.0
    %419 = vmatpush.msra.mxu0 0.0
    %420 = vmatpush.msra.mxu0 0.0
    %v421 = vand.u32 %v55, 4294901760
    %v422 = vsub.f32 %v55, %v421
    %423 = vmatpush.msra.mxu0 %v422
    %v424 = vand.u32 %v60, 4294901760
    %v425 = vsub.f32 %v60, %v424
    %426 = vmatmul.f32.gmra.mxu0 %v425
    %v427 = vpop.f32.mrf.mxu0
    %v428 = vadd.f32 %v404, %v427
    %429 = vdwg.mxu0
    %430 = vmatpush.msra.mxu0 0.0
    %431 = vmatpush.msra.mxu0 0.0
    %432 = vmatpush.msra.mxu0 0.0
    %433 = vmatpush.msra.mxu0 0.0
    %434 = vmatpush.msra.mxu0 0.0
    %435 = vmatpush.msra.mxu0 0.0
    %436 = vmatpush.msra.mxu0 0.0
    %437 = vmatpush.msra.mxu0 0.0
    %438 = vmatpush.msra.mxu0 0.0
    %439 = vmatpush.msra.mxu0 0.0
    %440 = vmatpush.msra.mxu0 0.0
    %441 = vmatpush.msra.mxu0 0.0
    %442 = vmatpush.msra.mxu0 0.0
    %443 = vmatpush.msra.mxu0 0.0
    %444 = vmatpush.msra.mxu0 0.0
    %v445 = vand.u32 %v55, 4294901760
    %446 = vmatpush.msra.mxu0 %v445
    %v447 = vand.u32 %v60, 4294901760
    %v448 = vsub.f32 %v60, %v447
    %v449 = vand.u32 %v448, 4294901760
    %450 = vmatmul.f32.gmra.mxu0 %v449
    %v451 = vpop.f32.mrf.mxu0
    %v452 = vadd.f32 %v428, %v451
    %453 = vdwg.mxu0
    %454 = vmatpush.msra.mxu0 0.0
    %455 = vmatpush.msra.mxu0 0.0
    %456 = vmatpush.msra.mxu0 0.0
    %457 = vmatpush.msra.mxu0 0.0
    %458 = vmatpush.msra.mxu0 0.0
    %459 = vmatpush.msra.mxu0 0.0
    %460 = vmatpush.msra.mxu0 0.0
    %461 = vmatpush.msra.mxu0 0.0
    %462 = vmatpush.msra.mxu0 0.0
    %463 = vmatpush.msra.mxu0 0.0
    %464 = vmatpush.msra.mxu0 0.0
    %465 = vmatpush.msra.mxu0 0.0
    %466 = vmatpush.msra.mxu0 0.0
    %467 = vmatpush.msra.mxu0 0.0
    %468 = vmatpush.msra.mxu0 0.0
    %v469 = vand.u32 %v55, 4294901760
    %v470 = vsub.f32 %v55, %v469
    %v471 = vand.u32 %v470, 4294901760
    %472 = vmatpush.msra.mxu0 %v471
    %v473 = vand.u32 %v60, 4294901760
    %474 = vmatmul.f32.gmra.mxu0 %v473
    %v475 = vpop.f32.mrf.mxu0
    %v476 = vadd.f32 %v452, %v475
    %477 = vdwg.mxu0
    %478 = vmatpush.msra.mxu0 0.0
    %479 = vmatpush.msra.mxu0 0.0
    %480 = vmatpush.msra.mxu0 0.0
    %481 = vmatpush.msra.mxu0 0.0
    %482 = vmatpush.msra.mxu0 0.0
    %483 = vmatpush.msra.mxu0 0.0
    %484 = vmatpush.msra.mxu0 0.0
    %485 = vmatpush.msra.mxu0 0.0
    %486 = vmatpush.msra.mxu0 0.0
    %487 = vmatpush.msra.mxu0 0.0
    %488 = vmatpush.msra.mxu0 0.0
    %489 = vmatpush.msra.mxu0 0.0
    %490 = vmatpush.msra.mxu0 0.0
    %491 = vmatpush.msra.mxu0 0.0
    %492 = vmatpush.msra.mxu0 0.0
    %v493 = vand.u32 %v55, 4294901760
    %494 = vmatpush.msra.mxu0 %v493
    %v495 = vand.u32 %v60, 4294901760
    %496 = vmatmul.f32.gmra.mxu0 %v495
    %v497 = vpop.f32.mrf.mxu0
    %v498 = vadd.f32 %v476, %v497
    %499 = vdwg.mxu0
    %500 = vmatpush.msra.mxu0 0.0
    %501 = vmatpush.msra.mxu0 0.0
    %502 = vmatpush.msra.mxu0 0.0
    %503 = vmatpush.msra.mxu0 0.0
    %504 = vmatpush.msra.mxu0 0.0
    %505 = vmatpush.msra.mxu0 0.0
    %506 = vmatpush.msra.mxu0 0.0
    %507 = vmatpush.msra.mxu0 0.0
    %508 = vmatpush.msra.mxu0 0.0
    %509 = vmatpush.msra.mxu0 0.0
    %510 = vmatpush.msra.mxu0 0.0
    %511 = vmatpush.msra.mxu0 0.0
    %512 = vmatpush.msra.mxu0 0.0
    %513 = vmatpush.msra.mxu0 0.0
    %514 = vmatpush.msra.mxu0 0.0
    %v515 = vand.u32 %v56, 4294901760
    %516 = vmatpush.msra.mxu0 %v515
    %v517 = vand.u32 %v60, 4294901760
    %v518 = vsub.f32 %v60, %v517
    %v519 = vand.u32 %v518, 4294901760
    %v520 = vsub.f32 %v518, %v519
    %v521 = vand.u32 %v520, 4294901760
    %522 = vmatmul.f32.gmra.mxu0 %v521
    %v523 = vpop.f32.mrf.mxu0
    %v524 = vadd.f32 0.0, %v523
    %525 = vdwg.mxu0
    %526 = vmatpush.msra.mxu0 0.0
    %527 = vmatpush.msra.mxu0 0.0
    %528 = vmatpush.msra.mxu0 0.0
    %529 = vmatpush.msra.mxu0 0.0
    %530 = vmatpush.msra.mxu0 0.0
    %531 = vmatpush.msra.mxu0 0.0
    %532 = vmatpush.msra.mxu0 0.0
    %533 = vmatpush.msra.mxu0 0.0
    %534 = vmatpush.msra.mxu0 0.0
    %535 = vmatpush.msra.mxu0 0.0
    %536 = vmatpush.msra.mxu0 0.0
    %537 = vmatpush.msra.mxu0 0.0
    %538 = vmatpush.msra.mxu0 0.0
    %539 = vmatpush.msra.mxu0 0.0
    %540 = vmatpush.msra.mxu0 0.0
    %v541 = vand.u32 %v56, 4294901760
    %v542 = vsub.f32 %v56, %v541
    %v543 = vand.u32 %v542, 4294901760
    %v544 = vsub.f32 %v542, %v543
    %v545 = vand.u32 %v544, 4294901760
    %546 = vmatpush.msra.mxu0 %v545
    %v547 = vand.u32 %v60, 4294901760
    %548 = vmatmul.f32.gmra.mxu0 %v547
    %v549 = vpop.f32.mrf.mxu0
    %v550 = vadd.f32 %v524, %v549
    %551 = vdwg.mxu0
    %552 = vmatpush.msra.mxu0 0.0
    %553 = vmatpush.msra.mxu0 0.0
    %554 = vmatpush.msra.mxu0 0.0
    %555 = vmatpush.msra.mxu0 0.0
    %556 = vmatpush.msra.mxu0 0.0
    %557 = vmatpush.msra.mxu0 0.0
    %558 = vmatpush.msra.mxu0 0.0
    %559 = vmatpush.msra.mxu0 0.0
    %560 = vmatpush.msra.mxu0 0.0
    %561 = vmatpush.msra.mxu0 0.0
    %562 = vmatpush.msra.mxu0 0.0
    %563 = vmatpush.msra.mxu0 0.0
    %564 = vmatpush.msra.mxu0 0.0
    %565 = vmatpush.msra.mxu0 0.0
    %566 = vmatpush.msra.mxu0 0.0
    %v567 = vand.u32 %v56, 4294901760
    %v568 = vsub.f32 %v56, %v567
    %569 = vmatpush.msra.mxu0 %v568
    %v570 = vand.u32 %v60, 4294901760
    %v571 = vsub.f32 %v60, %v570
    %572 = vmatmul.f32.gmra.mxu0 %v571
    %v573 = vpop.f32.mrf.mxu0
    %v574 = vadd.f32 %v550, %v573
    %575 = vdwg.mxu0
    %576 = vmatpush.msra.mxu0 0.0
    %577 = vmatpush.msra.mxu0 0.0
    %578 = vmatpush.msra.mxu0 0.0
    %579 = vmatpush.msra.mxu0 0.0
    %580 = vmatpush.msra.mxu0 0.0
    %581 = vmatpush.msra.mxu0 0.0
    %582 = vmatpush.msra.mxu0 0.0
    %583 = vmatpush.msra.mxu0 0.0
    %584 = vmatpush.msra.mxu0 0.0
    %585 = vmatpush.msra.mxu0 0.0
    %586 = vmatpush.msra.mxu0 0.0
    %587 = vmatpush.msra.mxu0 0.0
    %588 = vmatpush.msra.mxu0 0.0
    %589 = vmatpush.msra.mxu0 0.0
    %590 = vmatpush.msra.mxu0 0.0
    %v591 = vand.u32 %v56, 4294901760
    %592 = vmatpush.msra.mxu0 %v591
    %v593 = vand.u32 %v60, 4294901760
    %v594 = vsub.f32 %v60, %v593
    %v595 = vand.u32 %v594, 4294901760
    %596 = vmatmul.f32.gmra.mxu0 %v595
    %v597 = vpop.f32.mrf.mxu0
    %v598 = vadd.f32 %v574, %v597
    %599 = vdwg.mxu0
    %600 = vmatpush.msra.mxu0 0.0
    %601 = vmatpush.msra.mxu0 0.0
    %602 = vmatpush.msra.mxu0 0.0
    %603 = vmatpush.msra.mxu0 0.0
    %604 = vmatpush.msra.mxu0 0.0
    %605 = vmatpush.msra.mxu0 0.0
    %606 = vmatpush.msra.mxu0 0.0
    %607 = vmatpush.msra.mxu0 0.0
    %608 = vmatpush.msra.mxu0 0.0
    %609 = vmatpush.msra.mxu0 0.0
    %610 = vmatpush.msra.mxu0 0.0
    %611 = vmatpush.msra.mxu0 0.0
    %612 = vmatpush.msra.mxu0 0.0
    %613 = vmatpush.msra.mxu0 0.0
    %614 = vmatpush.msra.mxu0 0.0
    %v615 = vand.u32 %v56, 4294901760
    %v616 = vsub.f32 %v56, %v615
    %v617 = vand.u32 %v616, 4294901760
    %618 = vmatpush.msra.mxu0 %v617
    %v619 = vand.u32 %v60, 4294901760
    %620 = vmatmul.f32.gmra.mxu0 %v619
    %v621 = vpop.f32.mrf.mxu0
    %v622 = vadd.f32 %v598, %v621
    %623 = vdwg.mxu0
    %624 = vmatpush.msra.mxu0 0.0
    %625 = vmatpush.msra.mxu0 0.0
    %626 = vmatpush.msra.mxu0 0.0
    %627 = vmatpush.msra.mxu0 0.0
    %628 = vmatpush.msra.mxu0 0.0
    %629 = vmatpush.msra.mxu0 0.0
    %630 = vmatpush.msra.mxu0 0.0
    %631 = vmatpush.msra.mxu0 0.0
    %632 = vmatpush.msra.mxu0 0.0
    %633 = vmatpush.msra.mxu0 0.0
    %634 = vmatpush.msra.mxu0 0.0
    %635 = vmatpush.msra.mxu0 0.0
    %636 = vmatpush.msra.mxu0 0.0
    %637 = vmatpush.msra.mxu0 0.0
    %638 = vmatpush.msra.mxu0 0.0
    %v639 = vand.u32 %v56, 4294901760
    %640 = vmatpush.msra.mxu0 %v639
    %v641 = vand.u32 %v60, 4294901760
    %642 = vmatmul.f32.gmra.mxu0 %v641
    %v643 = vpop.f32.mrf.mxu0
    %v644 = vadd.f32 %v622, %v643
    %645 = vdwg.mxu0
    %v646 = vld [vmem:[%s4] sm:$0x3]
    %v647 = vld [vmem:[%s5] sm:$0x3]
    %vm648 = vcmask 1041408
    %v649 = vsel %vm648, %v206, 0.0
    %v650 = vsel %vm648, %v352, 0.0
    %v651 = vadd.f32 %v649, %v650
    %v652 = vsel %vm648, %v498, 0.0
    %v653 = vadd.f32 %v651, %v652
    %v654 = vsel %vm648, %v644, 0.0
    %v655 = vadd.f32 %v653, %v654
    %656 = vadd.xlane.f32.xlu0 %v655
    %v657 = vpop.xlane.xlu0 %656
    %v658 = vrcp.pop 512.0
    %v659 = vmul.f32 512.0, %v658
    %v660 = vsub.f32 1.0, %v659
    %v661 = vmul.f32 %v658, %v660
    %v662 = vadd.f32 %v658, %v661
    %vm663 = vweird.f32 %v658
    %v664 = vsel %vm663, %v658, %v662
    %v665 = vmul.f32 %v657, %v664
    %v666 = vsub.f32 %v206, %v665
    %v667 = vsub.f32 %v352, %v665
    %v668 = vsub.f32 %v498, %v665
    %v669 = vsub.f32 %v644, %v665
    %v670 = vmul.f32 %v666, %v666
    %v671 = vmul.f32 %v667, %v667
    %v672 = vmul.f32 %v668, %v668
    %v673 = vmul.f32 %v669, %v669
    %v674 = vsel %vm648, %v670, 0.0
    %v675 = vsel %vm648, %v671, 0.0
    %v676 = vadd.f32 %v674, %v675
    %v677 = vsel %vm648, %v672, 0.0
    %v678 = vadd.f32 %v676, %v677
    %v679 = vsel %vm648, %v673, 0.0
    %v680 = vadd.f32 %v678, %v679
    %681 = vadd.xlane.f32.xlu0 %v680
    %v682 = vpop.xlane.xlu0 %681
    %v683 = vmul.f32 %v682, %v664
    %v684 = vadd.f32 %v683, 1e-05
    %v685 = vrsqrt.pop %v684
    %v686 = vmul.f32 %v685, %v684
    %v687 = vmul.f32 %v686, %v685
    %v688 = vmul.f32 0.5, %v687
    %v689 = vsub.f32 1.5, %v688
    %v690 = vmul.f32 %v685, %v689
    %vm691 = vweird.f32 %v684
    %vm692 = vweird.f32 %v685
    %vm693 = vmor %vm691, %vm692
    %v694 = vsel %vm693, %v685, %v690
    %v695 = vmul.f32 %v646, %v694
    %v696 = vmul.f32 %v665, %v695
    %v697 = vsub.f32 %v647, %v696
    %699 = vset.pattern.permute.xlu0 0
    %700 = vperm.xlu0 %699, %v695
    %v701 = vpop.permute.xlu0 %700
    %v703 = vmul.f32 %v206, %v701
    %v704 = vmul.f32 %v352, %v701
    %v705 = vmul.f32 %v498, %v701
    %v706 = vmul.f32 %v644, %v701
    %708 = vset.pattern.permute.xlu0 0
    %709 = vperm.xlu0 %708, %v697
    %v710 = vpop.permute.xlu0 %709
    %v712 = vadd.f32 %v703, %v710
    %v713 = vadd.f32 %v704, %v710
    %v714 = vadd.f32 %v705, %v710
    %v715 = vadd.f32 %v706, %v710
    %v716 = vmax.f32 %v712, 0.0
    %v717 = vmax.f32 %v713, 0.0
    %v718 = vmax.f32 %v714, 0.0
    %v719 = vmax.f32 %v715, 0.0
    %v720 = vlaneseq
    %v721 = vand.u32 %v720, 127
    %v722 = vadd.s32 %v721, 128
    %v723 = vadd.s32 %v721, 256
    %v724 = vadd.s32 %v721, 384
    %vm725 = vcmp.lt.s32.totalorder %v721, 0
    %v726 = vsub.s32 0, %v721
    %v727 = vsel %vm725, %v726, %v721
    %v728 = vshrl.u32 %v727, 4
    %v729 = vand.u32 %v727, 15
    %v730 = vsub.s32 0, %v729
    %v731 = vsel %vm725, %v730, %v729
    %vm732 = vcmp.lt.s32.totalorder %v722, 0
    %v733 = vsub.s32 0, %v722
    %v734 = vsel %vm732, %v733, %v722
    %v735 = vshrl.u32 %v734, 4
    %v736 = vand.u32 %v734, 15
    %v737 = vsub.s32 0, %v736
    %v738 = vsel %vm732, %v737, %v736
    %vm739 = vcmp.lt.s32.totalorder %v723, 0
    %v740 = vsub.s32 0, %v723
    %v741 = vsel %vm739, %v740, %v723
    %v742 = vshrl.u32 %v741, 4
    %v743 = vand.u32 %v741, 15
    %v744 = vsub.s32 0, %v743
    %v745 = vsel %vm739, %v744, %v743
    %vm746 = vcmp.lt.s32.totalorder %v724, 0
    %v747 = vsub.s32 0, %v724
    %v748 = vsel %vm746, %v747, %v724
    %v749 = vshrl.u32 %v748, 4
    %v750 = vand.u32 %v748, 15
    %v751 = vsub.s32 0, %v750
    %v752 = vsel %vm746, %v751, %v750
    %vm753 = vcmp.ne.s32.totalorder %v731, 0
    %vm754 = vcmp.ne.s32.totalorder %v738, 0
    %vm755 = vcmp.ne.s32.totalorder %v745, 0
    %vm756 = vcmp.ne.s32.totalorder %v752, 0
    %vm757 = vcmp.lt.s32.totalorder %v731, 0
    %vm758 = vcmp.lt.s32.totalorder %v738, 0
    %vm759 = vcmp.lt.s32.totalorder %v745, 0
    %vm760 = vcmp.lt.s32.totalorder %v752, 0
    %vm761 = vmand %vm757, %vm753
    %vm762 = vmand %vm758, %vm754
    %vm763 = vmand %vm759, %vm755
    %vm764 = vmand %vm760, %vm756
    %v765 = vadd.s32 %v731, 16
    %v766 = vadd.s32 %v738, 16
    %v767 = vadd.s32 %v745, 16
    %v768 = vadd.s32 %v752, 16
    %v769 = vsel %vm761, %v765, %v731
    %v770 = vsel %vm762, %v766, %v738
    %v771 = vsel %vm763, %v767, %v745
    %v772 = vsel %vm764, %v768, %v752
    %vm773 = vcmp.lt.s32.totalorder %v721, 0
    %v774 = vsub.s32 0, %v721
    %v775 = vsel %vm773, %v774, %v721
    %v776 = vshrl.u32 %v775, 8
    %v777 = vand.u32 %v775, 255
    %v778 = vsub.s32 0, %v777
    %v779 = vsel %vm773, %v778, %v777
    %vm780 = vcmp.lt.s32.totalorder %v722, 0
    %v781 = vsub.s32 0, %v722
    %v782 = vsel %vm780, %v781, %v722
    %v783 = vshrl.u32 %v782, 8
    %v784 = vand.u32 %v782, 255
    %v785 = vsub.s32 0, %v784
    %v786 = vsel %vm780, %v785, %v784
    %vm787 = vcmp.lt.s32.totalorder %v723, 0
    %v788 = vsub.s32 0, %v723
    %v789 = vsel %vm787, %v788, %v723
    %v790 = vshrl.u32 %v789, 8
    %v791 = vand.u32 %v789, 255
    %v792 = vsub.s32 0, %v791
    %v793 = vsel %vm787, %v792, %v791
    %vm794 = vcmp.lt.s32.totalorder %v724, 0
    %v795 = vsub.s32 0, %v724
    %v796 = vsel %vm794, %v795, %v724
    %v797 = vshrl.u32 %v796, 8
    %v798 = vand.u32 %v796, 255
    %v799 = vsub.s32 0, %v798
    %v800 = vsel %vm794, %v799, %v798
    %vm801 = vcmp.ne.s32.totalorder %v779, 0
    %vm802 = vcmp.ne.s32.totalorder %v786, 0
    %vm803 = vcmp.ne.s32.totalorder %v793, 0
    %vm804 = vcmp.ne.s32.totalorder %v800, 0
    %vm805 = vcmp.lt.s32.totalorder %v779, 0
    %vm806 = vcmp.lt.s32.totalorder %v786, 0
    %vm807 = vcmp.lt.s32.totalorder %v793, 0
    %vm808 = vcmp.lt.s32.totalorder %v800, 0
    %vm809 = vmand %vm805, %vm801
    %vm810 = vmand %vm806, %vm802
    %vm811 = vmand %vm807, %vm803
    %vm812 = vmand %vm808, %vm804
    %v813 = vadd.s32 %v779, 256
    %v814 = vadd.s32 %v786, 256
    %v815 = vadd.s32 %v793, 256
    %v816 = vadd.s32 %v800, 256
    %v817 = vsel %vm809, %v813, %v779
    %v818 = vsel %vm810, %v814, %v786
    %v819 = vsel %vm811, %v815, %v793
    %v820 = vsel %vm812, %v816, %v800
    %vm821 = vcmp.eq.s32.totalorder %v769, 0
    %vm822 = vcmp.eq.s32.totalorder %v770, 0
    %vm823 = vcmp.eq.s32.totalorder %v771, 0
    %vm824 = vcmp.eq.s32.totalorder %v772, 0
    %vm825 = vcmp.eq.s32.totalorder %v769, 15
    %vm826 = vcmp.eq.s32.totalorder %v770, 15
    %vm827 = vcmp.eq.s32.totalorder %v771, 15
    %vm828 = vcmp.eq.s32.totalorder %v772, 15
    %vm829 = vcmp.lt.s32.totalorder %v817, 16
    %vm830 = vcmp.lt.s32.totalorder %v818, 16
    %vm831 = vcmp.lt.s32.totalorder %v819, 16
    %vm832 = vcmp.lt.s32.totalorder %v820, 16
    %vm833 = vcmp.ge.s32.totalorder %v817, 240
    %vm834 = vcmp.ge.s32.totalorder %v818, 240
    %vm835 = vcmp.ge.s32.totalorder %v819, 240
    %vm836 = vcmp.ge.s32.totalorder %v820, 240
    %837 = vrot.lane.b32.xlu0 %v716, 16
    %v838 = vpop.permute.xlu0 %837
    %839 = vrot.lane.b32.xlu0 %v717, 16
    %v840 = vpop.permute.xlu0 %839
    %841 = vrot.lane.b32.xlu0 %v718, 16
    %v842 = vpop.permute.xlu0 %841
    %843 = vrot.lane.b32.xlu0 %v719, 16
    %v844 = vpop.permute.xlu0 %843
    %vm845 = vcmp.lt.s32.totalorder %v721, 16
    %v846 = vsel %vm845, %v842, %v844
    %v847 = vsel %vm845, %v840, %v842
    %v848 = vsel %vm845, %v838, %v840
    %v849 = vsel %vm845, %v844, %v838
    %850 = vrot.lane.b32.xlu0 %v716, 112
    %v851 = vpop.permute.xlu0 %850
    %852 = vrot.lane.b32.xlu0 %v717, 112
    %v853 = vpop.permute.xlu0 %852
    %854 = vrot.lane.b32.xlu0 %v718, 112
    %v855 = vpop.permute.xlu0 %854
    %856 = vrot.lane.b32.xlu0 %v719, 112
    %v857 = vpop.permute.xlu0 %856
    %vm858 = vcmp.lt.s32.totalorder %v721, 112
    %v859 = vsel %vm858, %v855, %v857
    %v860 = vsel %vm858, %v853, %v855
    %v861 = vsel %vm858, %v851, %v853
    %v862 = vsel %vm858, %v857, %v851
    %v863 = vsel %vm829, %v861, %v849
    %v864 = vsel %vm830, %v860, %v848
    %v865 = vsel %vm831, %v859, %v847
    %v866 = vsel %vm832, %v862, %v846
    %v867 = vsel %vm833, %v849, %v861
    %v868 = vsel %vm834, %v848, %v860
    %v869 = vsel %vm835, %v847, %v859
    %v870 = vsel %vm836, %v846, %v862
    %871 = vrot.lane.b32.xlu0 %v863, 1
    %v872 = vpop.permute.xlu0 %871
    %873 = vrot.lane.b32.xlu0 %v864, 1
    %v874 = vpop.permute.xlu0 %873
    %875 = vrot.lane.b32.xlu0 %v865, 1
    %v876 = vpop.permute.xlu0 %875
    %877 = vrot.lane.b32.xlu0 %v866, 1
    %v878 = vpop.permute.xlu0 %877
    %vm879 = vcmp.lt.s32.totalorder %v721, 1
    %v880 = vsel %vm879, %v876, %v878
    %v881 = vsel %vm879, %v874, %v876
    %v882 = vsel %vm879, %v872, %v874
    %v883 = vsel %vm879, %v878, %v872
    %884 = vrot.lane.b32.xlu0 %v863, 127
    %v885 = vpop.permute.xlu0 %884
    %886 = vrot.lane.b32.xlu0 %v864, 127
    %v887 = vpop.permute.xlu0 %886
    %888 = vrot.lane.b32.xlu0 %v865, 127
    %v889 = vpop.permute.xlu0 %888
    %890 = vrot.lane.b32.xlu0 %v866, 127
    %v891 = vpop.permute.xlu0 %890
    %vm892 = vcmp.lt.s32.totalorder %v721, 127
    %v893 = vsel %vm892, %v889, %v891
    %v894 = vsel %vm892, %v887, %v889
    %v895 = vsel %vm892, %v885, %v887
    %v896 = vsel %vm892, %v891, %v885
    %v897 = vsel %vm821, %v895, %v883
    %v898 = vsel %vm822, %v894, %v882
    %v899 = vsel %vm823, %v893, %v881
    %v900 = vsel %vm824, %v896, %v880
    %v901 = vsel %vm825, %v883, %v895
    %v902 = vsel %vm826, %v882, %v894
    %v903 = vsel %vm827, %v881, %v893
    %v904 = vsel %vm828, %v880, %v896
    %v905 = vld [vmem:[%s2] sm:$0x3]
    %907 = vset.pattern.permute.xlu0 0
    %908 = vperm.xlu0 %907, %v905
    %v909 = vpop.permute.xlu0 %908
    %v911 = vmul.f32 %v909, %v897
    %v912 = vmul.f32 %v909, %v898
    %v913 = vmul.f32 %v909, %v899
    %v914 = vmul.f32 %v909, %v900
    %v915 = vadd.f32 %v911, 0.0
    %v916 = vadd.f32 %v912, 0.0
    %v917 = vadd.f32 %v913, 0.0
    %v918 = vadd.f32 %v914, 0.0
    %s919 = scalar_lea.vmem %s2, 2
    %v920 = vld [vmem:[%s919] sm:$0x3]
    %922 = vset.pattern.permute.xlu0 0
    %923 = vperm.xlu0 %922, %v920
    %v924 = vpop.permute.xlu0 %923
    %v926 = vmul.f32 %v924, %v863
    %v927 = vmul.f32 %v924, %v864
    %v928 = vmul.f32 %v924, %v865
    %v929 = vmul.f32 %v924, %v866
    %v930 = vadd.f32 %v915, %v926
    %v931 = vadd.f32 %v916, %v927
    %v932 = vadd.f32 %v917, %v928
    %v933 = vadd.f32 %v918, %v929
    %s934 = scalar_lea.vmem %s2, 4
    %v935 = vld [vmem:[%s934] sm:$0x3]
    %937 = vset.pattern.permute.xlu0 0
    %938 = vperm.xlu0 %937, %v935
    %v939 = vpop.permute.xlu0 %938
    %v941 = vmul.f32 %v939, %v901
    %v942 = vmul.f32 %v939, %v902
    %v943 = vmul.f32 %v939, %v903
    %v944 = vmul.f32 %v939, %v904
    %v945 = vadd.f32 %v930, %v941
    %v946 = vadd.f32 %v931, %v942
    %v947 = vadd.f32 %v932, %v943
    %v948 = vadd.f32 %v933, %v944
    %949 = vrot.lane.b32.xlu0 %v716, 1
    %v950 = vpop.permute.xlu0 %949
    %951 = vrot.lane.b32.xlu0 %v717, 1
    %v952 = vpop.permute.xlu0 %951
    %953 = vrot.lane.b32.xlu0 %v718, 1
    %v954 = vpop.permute.xlu0 %953
    %955 = vrot.lane.b32.xlu0 %v719, 1
    %v956 = vpop.permute.xlu0 %955
    %v957 = vsel %vm879, %v954, %v956
    %v958 = vsel %vm879, %v952, %v954
    %v959 = vsel %vm879, %v950, %v952
    %v960 = vsel %vm879, %v956, %v950
    %961 = vrot.lane.b32.xlu0 %v716, 127
    %v962 = vpop.permute.xlu0 %961
    %963 = vrot.lane.b32.xlu0 %v717, 127
    %v964 = vpop.permute.xlu0 %963
    %965 = vrot.lane.b32.xlu0 %v718, 127
    %v966 = vpop.permute.xlu0 %965
    %967 = vrot.lane.b32.xlu0 %v719, 127
    %v968 = vpop.permute.xlu0 %967
    %v969 = vsel %vm892, %v966, %v968
    %v970 = vsel %vm892, %v964, %v966
    %v971 = vsel %vm892, %v962, %v964
    %v972 = vsel %vm892, %v968, %v962
    %v973 = vsel %vm821, %v971, %v960
    %v974 = vsel %vm822, %v970, %v959
    %v975 = vsel %vm823, %v969, %v958
    %v976 = vsel %vm824, %v972, %v957
    %v977 = vsel %vm825, %v960, %v971
    %v978 = vsel %vm826, %v959, %v970
    %v979 = vsel %vm827, %v958, %v969
    %v980 = vsel %vm828, %v957, %v972
    %s981 = scalar_lea.vmem %s2, 6
    %v982 = vld [vmem:[%s981] sm:$0x3]
    %984 = vset.pattern.permute.xlu0 0
    %985 = vperm.xlu0 %984, %v982
    %v986 = vpop.permute.xlu0 %985
    %v988 = vmul.f32 %v986, %v973
    %v989 = vmul.f32 %v986, %v974
    %v990 = vmul.f32 %v986, %v975
    %v991 = vmul.f32 %v986, %v976
    %v992 = vadd.f32 %v945, %v988
    %v993 = vadd.f32 %v946, %v989
    %v994 = vadd.f32 %v947, %v990
    %v995 = vadd.f32 %v948, %v991
    %s996 = scalar_lea.vmem %s2, 8
    %v997 = vld [vmem:[%s996] sm:$0x3]
    %999 = vset.pattern.permute.xlu0 0
    %1000 = vperm.xlu0 %999, %v997
    %v1001 = vpop.permute.xlu0 %1000
    %v1003 = vmul.f32 %v1001, %v716
    %v1004 = vmul.f32 %v1001, %v717
    %v1005 = vmul.f32 %v1001, %v718
    %v1006 = vmul.f32 %v1001, %v719
    %v1007 = vadd.f32 %v992, %v1003
    %v1008 = vadd.f32 %v993, %v1004
    %v1009 = vadd.f32 %v994, %v1005
    %v1010 = vadd.f32 %v995, %v1006
    %s1011 = scalar_lea.vmem %s2, 10
    %v1012 = vld [vmem:[%s1011] sm:$0x3]
    %1014 = vset.pattern.permute.xlu0 0
    %1015 = vperm.xlu0 %1014, %v1012
    %v1016 = vpop.permute.xlu0 %1015
    %v1018 = vmul.f32 %v1016, %v977
    %v1019 = vmul.f32 %v1016, %v978
    %v1020 = vmul.f32 %v1016, %v979
    %v1021 = vmul.f32 %v1016, %v980
    %v1022 = vadd.f32 %v1007, %v1018
    %v1023 = vadd.f32 %v1008, %v1019
    %v1024 = vadd.f32 %v1009, %v1020
    %v1025 = vadd.f32 %v1010, %v1021
    %1026 = vrot.lane.b32.xlu0 %v867, 1
    %v1027 = vpop.permute.xlu0 %1026
    %1028 = vrot.lane.b32.xlu0 %v868, 1
    %v1029 = vpop.permute.xlu0 %1028
    %1030 = vrot.lane.b32.xlu0 %v869, 1
    %v1031 = vpop.permute.xlu0 %1030
    %1032 = vrot.lane.b32.xlu0 %v870, 1
    %v1033 = vpop.permute.xlu0 %1032
    %v1034 = vsel %vm879, %v1031, %v1033
    %v1035 = vsel %vm879, %v1029, %v1031
    %v1036 = vsel %vm879, %v1027, %v1029
    %v1037 = vsel %vm879, %v1033, %v1027
    %1038 = vrot.lane.b32.xlu0 %v867, 127
    %v1039 = vpop.permute.xlu0 %1038
    %1040 = vrot.lane.b32.xlu0 %v868, 127
    %v1041 = vpop.permute.xlu0 %1040
    %1042 = vrot.lane.b32.xlu0 %v869, 127
    %v1043 = vpop.permute.xlu0 %1042
    %1044 = vrot.lane.b32.xlu0 %v870, 127
    %v1045 = vpop.permute.xlu0 %1044
    %v1046 = vsel %vm892, %v1043, %v1045
    %v1047 = vsel %vm892, %v1041, %v1043
    %v1048 = vsel %vm892, %v1039, %v1041
    %v1049 = vsel %vm892, %v1045, %v1039
    %v1050 = vsel %vm821, %v1048, %v1037
    %v1051 = vsel %vm822, %v1047, %v1036
    %v1052 = vsel %vm823, %v1046, %v1035
    %v1053 = vsel %vm824, %v1049, %v1034
    %v1054 = vsel %vm825, %v1037, %v1048
    %v1055 = vsel %vm826, %v1036, %v1047
    %v1056 = vsel %vm827, %v1035, %v1046
    %v1057 = vsel %vm828, %v1034, %v1049
    %s1058 = scalar_lea.vmem %s2, 12
    %v1059 = vld [vmem:[%s1058] sm:$0x3]
    %1061 = vset.pattern.permute.xlu0 0
    %1062 = vperm.xlu0 %1061, %v1059
    %v1063 = vpop.permute.xlu0 %1062
    %v1065 = vmul.f32 %v1063, %v1050
    %v1066 = vmul.f32 %v1063, %v1051
    %v1067 = vmul.f32 %v1063, %v1052
    %v1068 = vmul.f32 %v1063, %v1053
    %v1069 = vadd.f32 %v1022, %v1065
    %v1070 = vadd.f32 %v1023, %v1066
    %v1071 = vadd.f32 %v1024, %v1067
    %v1072 = vadd.f32 %v1025, %v1068
    %s1073 = scalar_lea.vmem %s2, 14
    %v1074 = vld [vmem:[%s1073] sm:$0x3]
    %1076 = vset.pattern.permute.xlu0 0
    %1077 = vperm.xlu0 %1076, %v1074
    %v1078 = vpop.permute.xlu0 %1077
    %v1080 = vmul.f32 %v1078, %v867
    %v1081 = vmul.f32 %v1078, %v868
    %v1082 = vmul.f32 %v1078, %v869
    %v1083 = vmul.f32 %v1078, %v870
    %v1084 = vadd.f32 %v1069, %v1080
    %v1085 = vadd.f32 %v1070, %v1081
    %v1086 = vadd.f32 %v1071, %v1082
    %v1087 = vadd.f32 %v1072, %v1083
    %s1088 = scalar_lea.vmem %s2, 16
    %v1089 = vld [vmem:[%s1088] sm:$0x3]
    %1091 = vset.pattern.permute.xlu0 0
    %1092 = vperm.xlu0 %1091, %v1089
    %v1093 = vpop.permute.xlu0 %1092
    %v1095 = vmul.f32 %v1093, %v1054
    %v1096 = vmul.f32 %v1093, %v1055
    %v1097 = vmul.f32 %v1093, %v1056
    %v1098 = vmul.f32 %v1093, %v1057
    %v1099 = vadd.f32 %v1084, %v1095
    %v1100 = vadd.f32 %v1085, %v1096
    %v1101 = vadd.f32 %v1086, %v1097
    %v1102 = vadd.f32 %v1087, %v1098
    %v1103 = vld [vmem:[%s6] sm:$0x3]
    %v1104 = vld [vmem:[%s7] sm:$0x3]
    %v1105 = vsel %vm648, %v1099, 0.0
    %v1106 = vsel %vm648, %v1100, 0.0
    %v1107 = vadd.f32 %v1105, %v1106
    %v1108 = vsel %vm648, %v1101, 0.0
    %v1109 = vadd.f32 %v1107, %v1108
    %v1110 = vsel %vm648, %v1102, 0.0
    %v1111 = vadd.f32 %v1109, %v1110
    %1112 = vadd.xlane.f32.xlu0 %v1111
    %v1113 = vpop.xlane.xlu0 %1112
    %v1114 = vmul.f32 %v1113, %v664
    %v1115 = vsub.f32 %v1099, %v1114
    %v1116 = vsub.f32 %v1100, %v1114
    %v1117 = vsub.f32 %v1101, %v1114
    %v1118 = vsub.f32 %v1102, %v1114
    %v1119 = vmul.f32 %v1115, %v1115
    %v1120 = vmul.f32 %v1116, %v1116
    %v1121 = vmul.f32 %v1117, %v1117
    %v1122 = vmul.f32 %v1118, %v1118
    %v1123 = vsel %vm648, %v1119, 0.0
    %v1124 = vsel %vm648, %v1120, 0.0
    %v1125 = vadd.f32 %v1123, %v1124
    %v1126 = vsel %vm648, %v1121, 0.0
    %v1127 = vadd.f32 %v1125, %v1126
    %v1128 = vsel %vm648, %v1122, 0.0
    %v1129 = vadd.f32 %v1127, %v1128
    %1130 = vadd.xlane.f32.xlu0 %v1129
    %v1131 = vpop.xlane.xlu0 %1130
    %v1132 = vmul.f32 %v1131, %v664
    %v1133 = vadd.f32 %v1132, 1e-05
    %v1134 = vrsqrt.pop %v1133
    %v1135 = vmul.f32 %v1134, %v1133
    %v1136 = vmul.f32 %v1135, %v1134
    %v1137 = vmul.f32 0.5, %v1136
    %v1138 = vsub.f32 1.5, %v1137
    %v1139 = vmul.f32 %v1134, %v1138
    %vm1140 = vweird.f32 %v1133
    %vm1141 = vweird.f32 %v1134
    %vm1142 = vmor %vm1140, %vm1141
    %v1143 = vsel %vm1142, %v1134, %v1139
    %v1144 = vmul.f32 %v1103, %v1143
    %v1145 = vmul.f32 %v1114, %v1144
    %v1146 = vsub.f32 %v1104, %v1145
    %1148 = vset.pattern.permute.xlu0 0
    %1149 = vperm.xlu0 %1148, %v1144
    %v1150 = vpop.permute.xlu0 %1149
    %v1152 = vmul.f32 %v1099, %v1150
    %v1153 = vmul.f32 %v1100, %v1150
    %v1154 = vmul.f32 %v1101, %v1150
    %v1155 = vmul.f32 %v1102, %v1150
    %1157 = vset.pattern.permute.xlu0 0
    %1158 = vperm.xlu0 %1157, %v1146
    %v1159 = vpop.permute.xlu0 %1158
    %v1161 = vadd.f32 %v1152, %v1159
    %v1162 = vadd.f32 %v1153, %v1159
    %v1163 = vadd.f32 %v1154, %v1159
    %v1164 = vadd.f32 %v1155, %v1159
    %v1165 = vmax.f32 %v1161, 0.0
    %v1166 = vmax.f32 %v1162, 0.0
    %v1167 = vmax.f32 %v1163, 0.0
    %v1168 = vmax.f32 %v1164, 0.0
    %v1169 = vld [vmem:[%s3] sm:$0xf]
    %vm1170 = vcmask 15360
    %v1172 = vsel %vm1170, %v1169, 0
    %v1175 = vsel %vm648, %v1165, 0
    %v1178 = vsel %vm648, %v1166, 0
    %v1181 = vsel %vm648, %v1167, 0
    %v1184 = vsel %vm648, %v1168, 0
    %1186 = vmatpush.msra.mxu0 0.0
    %1187 = vmatpush.msra.mxu0 0.0
    %1188 = vmatpush.msra.mxu0 0.0
    %1189 = vmatpush.msra.mxu0 0.0
    %1190 = vmatpush.msra.mxu0 0.0
    %1191 = vmatpush.msra.mxu0 0.0
    %1192 = vmatpush.msra.mxu0 0.0
    %1193 = vmatpush.msra.mxu0 0.0
    %1194 = vmatpush.msra.mxu0 0.0
    %1195 = vmatpush.msra.mxu0 0.0
    %1196 = vmatpush.msra.mxu0 0.0
    %1197 = vmatpush.msra.mxu0 0.0
    %1198 = vmatpush.msra.mxu0 0.0
    %1199 = vmatpush.msra.mxu0 0.0
    %1200 = vmatpush.msra.mxu0 0.0
    %v1201 = vand.u32 %v1175, 4294901760
    %1202 = vmatpush.msra.mxu0 %v1201
    %v1203 = vand.u32 %v1172, 4294901760
    %v1204 = vsub.f32 %v1172, %v1203
    %v1205 = vand.u32 %v1204, 4294901760
    %v1206 = vsub.f32 %v1204, %v1205
    %v1207 = vand.u32 %v1206, 4294901760
    %1208 = vmatmul.f32.gmra.mxu0 %v1207
    %v1209 = vpop.f32.mrf.mxu0
    %v1210 = vadd.f32 0.0, %v1209
    %1211 = vdwg.mxu0
    %1212 = vmatpush.msra.mxu0 0.0
    %1213 = vmatpush.msra.mxu0 0.0
    %1214 = vmatpush.msra.mxu0 0.0
    %1215 = vmatpush.msra.mxu0 0.0
    %1216 = vmatpush.msra.mxu0 0.0
    %1217 = vmatpush.msra.mxu0 0.0
    %1218 = vmatpush.msra.mxu0 0.0
    %1219 = vmatpush.msra.mxu0 0.0
    %1220 = vmatpush.msra.mxu0 0.0
    %1221 = vmatpush.msra.mxu0 0.0
    %1222 = vmatpush.msra.mxu0 0.0
    %1223 = vmatpush.msra.mxu0 0.0
    %1224 = vmatpush.msra.mxu0 0.0
    %1225 = vmatpush.msra.mxu0 0.0
    %1226 = vmatpush.msra.mxu0 0.0
    %v1227 = vand.u32 %v1175, 4294901760
    %v1228 = vsub.f32 %v1175, %v1227
    %v1229 = vand.u32 %v1228, 4294901760
    %v1230 = vsub.f32 %v1228, %v1229
    %v1231 = vand.u32 %v1230, 4294901760
    %1232 = vmatpush.msra.mxu0 %v1231
    %v1233 = vand.u32 %v1172, 4294901760
    %1234 = vmatmul.f32.gmra.mxu0 %v1233
    %v1235 = vpop.f32.mrf.mxu0
    %v1236 = vadd.f32 %v1210, %v1235
    %1237 = vdwg.mxu0
    %1238 = vmatpush.msra.mxu0 0.0
    %1239 = vmatpush.msra.mxu0 0.0
    %1240 = vmatpush.msra.mxu0 0.0
    %1241 = vmatpush.msra.mxu0 0.0
    %1242 = vmatpush.msra.mxu0 0.0
    %1243 = vmatpush.msra.mxu0 0.0
    %1244 = vmatpush.msra.mxu0 0.0
    %1245 = vmatpush.msra.mxu0 0.0
    %1246 = vmatpush.msra.mxu0 0.0
    %1247 = vmatpush.msra.mxu0 0.0
    %1248 = vmatpush.msra.mxu0 0.0
    %1249 = vmatpush.msra.mxu0 0.0
    %1250 = vmatpush.msra.mxu0 0.0
    %1251 = vmatpush.msra.mxu0 0.0
    %1252 = vmatpush.msra.mxu0 0.0
    %v1253 = vand.u32 %v1175, 4294901760
    %v1254 = vsub.f32 %v1175, %v1253
    %1255 = vmatpush.msra.mxu0 %v1254
    %v1256 = vand.u32 %v1172, 4294901760
    %v1257 = vsub.f32 %v1172, %v1256
    %1258 = vmatmul.f32.gmra.mxu0 %v1257
    %v1259 = vpop.f32.mrf.mxu0
    %v1260 = vadd.f32 %v1236, %v1259
    %1261 = vdwg.mxu0
    %1262 = vmatpush.msra.mxu0 0.0
    %1263 = vmatpush.msra.mxu0 0.0
    %1264 = vmatpush.msra.mxu0 0.0
    %1265 = vmatpush.msra.mxu0 0.0
    %1266 = vmatpush.msra.mxu0 0.0
    %1267 = vmatpush.msra.mxu0 0.0
    %1268 = vmatpush.msra.mxu0 0.0
    %1269 = vmatpush.msra.mxu0 0.0
    %1270 = vmatpush.msra.mxu0 0.0
    %1271 = vmatpush.msra.mxu0 0.0
    %1272 = vmatpush.msra.mxu0 0.0
    %1273 = vmatpush.msra.mxu0 0.0
    %1274 = vmatpush.msra.mxu0 0.0
    %1275 = vmatpush.msra.mxu0 0.0
    %1276 = vmatpush.msra.mxu0 0.0
    %v1277 = vand.u32 %v1175, 4294901760
    %1278 = vmatpush.msra.mxu0 %v1277
    %v1279 = vand.u32 %v1172, 4294901760
    %v1280 = vsub.f32 %v1172, %v1279
    %v1281 = vand.u32 %v1280, 4294901760
    %1282 = vmatmul.f32.gmra.mxu0 %v1281
    %v1283 = vpop.f32.mrf.mxu0
    %v1284 = vadd.f32 %v1260, %v1283
    %1285 = vdwg.mxu0
    %1286 = vmatpush.msra.mxu0 0.0
    %1287 = vmatpush.msra.mxu0 0.0
    %1288 = vmatpush.msra.mxu0 0.0
    %1289 = vmatpush.msra.mxu0 0.0
    %1290 = vmatpush.msra.mxu0 0.0
    %1291 = vmatpush.msra.mxu0 0.0
    %1292 = vmatpush.msra.mxu0 0.0
    %1293 = vmatpush.msra.mxu0 0.0
    %1294 = vmatpush.msra.mxu0 0.0
    %1295 = vmatpush.msra.mxu0 0.0
    %1296 = vmatpush.msra.mxu0 0.0
    %1297 = vmatpush.msra.mxu0 0.0
    %1298 = vmatpush.msra.mxu0 0.0
    %1299 = vmatpush.msra.mxu0 0.0
    %1300 = vmatpush.msra.mxu0 0.0
    %v1301 = vand.u32 %v1175, 4294901760
    %v1302 = vsub.f32 %v1175, %v1301
    %v1303 = vand.u32 %v1302, 4294901760
    %1304 = vmatpush.msra.mxu0 %v1303
    %v1305 = vand.u32 %v1172, 4294901760
    %1306 = vmatmul.f32.gmra.mxu0 %v1305
    %v1307 = vpop.f32.mrf.mxu0
    %v1308 = vadd.f32 %v1284, %v1307
    %1309 = vdwg.mxu0
    %1310 = vmatpush.msra.mxu0 0.0
    %1311 = vmatpush.msra.mxu0 0.0
    %1312 = vmatpush.msra.mxu0 0.0
    %1313 = vmatpush.msra.mxu0 0.0
    %1314 = vmatpush.msra.mxu0 0.0
    %1315 = vmatpush.msra.mxu0 0.0
    %1316 = vmatpush.msra.mxu0 0.0
    %1317 = vmatpush.msra.mxu0 0.0
    %1318 = vmatpush.msra.mxu0 0.0
    %1319 = vmatpush.msra.mxu0 0.0
    %1320 = vmatpush.msra.mxu0 0.0
    %1321 = vmatpush.msra.mxu0 0.0
    %1322 = vmatpush.msra.mxu0 0.0
    %1323 = vmatpush.msra.mxu0 0.0
    %1324 = vmatpush.msra.mxu0 0.0
    %v1325 = vand.u32 %v1175, 4294901760
    %1326 = vmatpush.msra.mxu0 %v1325
    %v1327 = vand.u32 %v1172, 4294901760
    %1328 = vmatmul.f32.gmra.mxu0 %v1327
    %v1329 = vpop.f32.mrf.mxu0
    %v1330 = vadd.f32 %v1308, %v1329
    %1331 = vdwg.mxu0
    %1332 = vmatpush.msra.mxu0 0.0
    %1333 = vmatpush.msra.mxu0 0.0
    %1334 = vmatpush.msra.mxu0 0.0
    %1335 = vmatpush.msra.mxu0 0.0
    %1336 = vmatpush.msra.mxu0 0.0
    %1337 = vmatpush.msra.mxu0 0.0
    %1338 = vmatpush.msra.mxu0 0.0
    %1339 = vmatpush.msra.mxu0 0.0
    %1340 = vmatpush.msra.mxu0 0.0
    %1341 = vmatpush.msra.mxu0 0.0
    %1342 = vmatpush.msra.mxu0 0.0
    %1343 = vmatpush.msra.mxu0 0.0
    %1344 = vmatpush.msra.mxu0 0.0
    %1345 = vmatpush.msra.mxu0 0.0
    %1346 = vmatpush.msra.mxu0 0.0
    %v1347 = vand.u32 %v1178, 4294901760
    %1348 = vmatpush.msra.mxu0 %v1347
    %v1349 = vand.u32 %v1172, 4294901760
    %v1350 = vsub.f32 %v1172, %v1349
    %v1351 = vand.u32 %v1350, 4294901760
    %v1352 = vsub.f32 %v1350, %v1351
    %v1353 = vand.u32 %v1352, 4294901760
    %1354 = vmatmul.f32.gmra.mxu0 %v1353
    %v1355 = vpop.f32.mrf.mxu0
    %v1356 = vadd.f32 0.0, %v1355
    %1357 = vdwg.mxu0
    %1358 = vmatpush.msra.mxu0 0.0
    %1359 = vmatpush.msra.mxu0 0.0
    %1360 = vmatpush.msra.mxu0 0.0
    %1361 = vmatpush.msra.mxu0 0.0
    %1362 = vmatpush.msra.mxu0 0.0
    %1363 = vmatpush.msra.mxu0 0.0
    %1364 = vmatpush.msra.mxu0 0.0
    %1365 = vmatpush.msra.mxu0 0.0
    %1366 = vmatpush.msra.mxu0 0.0
    %1367 = vmatpush.msra.mxu0 0.0
    %1368 = vmatpush.msra.mxu0 0.0
    %1369 = vmatpush.msra.mxu0 0.0
    %1370 = vmatpush.msra.mxu0 0.0
    %1371 = vmatpush.msra.mxu0 0.0
    %1372 = vmatpush.msra.mxu0 0.0
    %v1373 = vand.u32 %v1178, 4294901760
    %v1374 = vsub.f32 %v1178, %v1373
    %v1375 = vand.u32 %v1374, 4294901760
    %v1376 = vsub.f32 %v1374, %v1375
    %v1377 = vand.u32 %v1376, 4294901760
    %1378 = vmatpush.msra.mxu0 %v1377
    %v1379 = vand.u32 %v1172, 4294901760
    %1380 = vmatmul.f32.gmra.mxu0 %v1379
    %v1381 = vpop.f32.mrf.mxu0
    %v1382 = vadd.f32 %v1356, %v1381
    %1383 = vdwg.mxu0
    %1384 = vmatpush.msra.mxu0 0.0
    %1385 = vmatpush.msra.mxu0 0.0
    %1386 = vmatpush.msra.mxu0 0.0
    %1387 = vmatpush.msra.mxu0 0.0
    %1388 = vmatpush.msra.mxu0 0.0
    %1389 = vmatpush.msra.mxu0 0.0
    %1390 = vmatpush.msra.mxu0 0.0
    %1391 = vmatpush.msra.mxu0 0.0
    %1392 = vmatpush.msra.mxu0 0.0
    %1393 = vmatpush.msra.mxu0 0.0
    %1394 = vmatpush.msra.mxu0 0.0
    %1395 = vmatpush.msra.mxu0 0.0
    %1396 = vmatpush.msra.mxu0 0.0
    %1397 = vmatpush.msra.mxu0 0.0
    %1398 = vmatpush.msra.mxu0 0.0
    %v1399 = vand.u32 %v1178, 4294901760
    %v1400 = vsub.f32 %v1178, %v1399
    %1401 = vmatpush.msra.mxu0 %v1400
    %v1402 = vand.u32 %v1172, 4294901760
    %v1403 = vsub.f32 %v1172, %v1402
    %1404 = vmatmul.f32.gmra.mxu0 %v1403
    %v1405 = vpop.f32.mrf.mxu0
    %v1406 = vadd.f32 %v1382, %v1405
    %1407 = vdwg.mxu0
    %1408 = vmatpush.msra.mxu0 0.0
    %1409 = vmatpush.msra.mxu0 0.0
    %1410 = vmatpush.msra.mxu0 0.0
    %1411 = vmatpush.msra.mxu0 0.0
    %1412 = vmatpush.msra.mxu0 0.0
    %1413 = vmatpush.msra.mxu0 0.0
    %1414 = vmatpush.msra.mxu0 0.0
    %1415 = vmatpush.msra.mxu0 0.0
    %1416 = vmatpush.msra.mxu0 0.0
    %1417 = vmatpush.msra.mxu0 0.0
    %1418 = vmatpush.msra.mxu0 0.0
    %1419 = vmatpush.msra.mxu0 0.0
    %1420 = vmatpush.msra.mxu0 0.0
    %1421 = vmatpush.msra.mxu0 0.0
    %1422 = vmatpush.msra.mxu0 0.0
    %v1423 = vand.u32 %v1178, 4294901760
    %1424 = vmatpush.msra.mxu0 %v1423
    %v1425 = vand.u32 %v1172, 4294901760
    %v1426 = vsub.f32 %v1172, %v1425
    %v1427 = vand.u32 %v1426, 4294901760
    %1428 = vmatmul.f32.gmra.mxu0 %v1427
    %v1429 = vpop.f32.mrf.mxu0
    %v1430 = vadd.f32 %v1406, %v1429
    %1431 = vdwg.mxu0
    %1432 = vmatpush.msra.mxu0 0.0
    %1433 = vmatpush.msra.mxu0 0.0
    %1434 = vmatpush.msra.mxu0 0.0
    %1435 = vmatpush.msra.mxu0 0.0
    %1436 = vmatpush.msra.mxu0 0.0
    %1437 = vmatpush.msra.mxu0 0.0
    %1438 = vmatpush.msra.mxu0 0.0
    %1439 = vmatpush.msra.mxu0 0.0
    %1440 = vmatpush.msra.mxu0 0.0
    %1441 = vmatpush.msra.mxu0 0.0
    %1442 = vmatpush.msra.mxu0 0.0
    %1443 = vmatpush.msra.mxu0 0.0
    %1444 = vmatpush.msra.mxu0 0.0
    %1445 = vmatpush.msra.mxu0 0.0
    %1446 = vmatpush.msra.mxu0 0.0
    %v1447 = vand.u32 %v1178, 4294901760
    %v1448 = vsub.f32 %v1178, %v1447
    %v1449 = vand.u32 %v1448, 4294901760
    %1450 = vmatpush.msra.mxu0 %v1449
    %v1451 = vand.u32 %v1172, 4294901760
    %1452 = vmatmul.f32.gmra.mxu0 %v1451
    %v1453 = vpop.f32.mrf.mxu0
    %v1454 = vadd.f32 %v1430, %v1453
    %1455 = vdwg.mxu0
    %1456 = vmatpush.msra.mxu0 0.0
    %1457 = vmatpush.msra.mxu0 0.0
    %1458 = vmatpush.msra.mxu0 0.0
    %1459 = vmatpush.msra.mxu0 0.0
    %1460 = vmatpush.msra.mxu0 0.0
    %1461 = vmatpush.msra.mxu0 0.0
    %1462 = vmatpush.msra.mxu0 0.0
    %1463 = vmatpush.msra.mxu0 0.0
    %1464 = vmatpush.msra.mxu0 0.0
    %1465 = vmatpush.msra.mxu0 0.0
    %1466 = vmatpush.msra.mxu0 0.0
    %1467 = vmatpush.msra.mxu0 0.0
    %1468 = vmatpush.msra.mxu0 0.0
    %1469 = vmatpush.msra.mxu0 0.0
    %1470 = vmatpush.msra.mxu0 0.0
    %v1471 = vand.u32 %v1178, 4294901760
    %1472 = vmatpush.msra.mxu0 %v1471
    %v1473 = vand.u32 %v1172, 4294901760
    %1474 = vmatmul.f32.gmra.mxu0 %v1473
    %v1475 = vpop.f32.mrf.mxu0
    %v1476 = vadd.f32 %v1454, %v1475
    %1477 = vdwg.mxu0
    %1478 = vmatpush.msra.mxu0 0.0
    %1479 = vmatpush.msra.mxu0 0.0
    %1480 = vmatpush.msra.mxu0 0.0
    %1481 = vmatpush.msra.mxu0 0.0
    %1482 = vmatpush.msra.mxu0 0.0
    %1483 = vmatpush.msra.mxu0 0.0
    %1484 = vmatpush.msra.mxu0 0.0
    %1485 = vmatpush.msra.mxu0 0.0
    %1486 = vmatpush.msra.mxu0 0.0
    %1487 = vmatpush.msra.mxu0 0.0
    %1488 = vmatpush.msra.mxu0 0.0
    %1489 = vmatpush.msra.mxu0 0.0
    %1490 = vmatpush.msra.mxu0 0.0
    %1491 = vmatpush.msra.mxu0 0.0
    %1492 = vmatpush.msra.mxu0 0.0
    %v1493 = vand.u32 %v1181, 4294901760
    %1494 = vmatpush.msra.mxu0 %v1493
    %v1495 = vand.u32 %v1172, 4294901760
    %v1496 = vsub.f32 %v1172, %v1495
    %v1497 = vand.u32 %v1496, 4294901760
    %v1498 = vsub.f32 %v1496, %v1497
    %v1499 = vand.u32 %v1498, 4294901760
    %1500 = vmatmul.f32.gmra.mxu0 %v1499
    %v1501 = vpop.f32.mrf.mxu0
    %v1502 = vadd.f32 0.0, %v1501
    %1503 = vdwg.mxu0
    %1504 = vmatpush.msra.mxu0 0.0
    %1505 = vmatpush.msra.mxu0 0.0
    %1506 = vmatpush.msra.mxu0 0.0
    %1507 = vmatpush.msra.mxu0 0.0
    %1508 = vmatpush.msra.mxu0 0.0
    %1509 = vmatpush.msra.mxu0 0.0
    %1510 = vmatpush.msra.mxu0 0.0
    %1511 = vmatpush.msra.mxu0 0.0
    %1512 = vmatpush.msra.mxu0 0.0
    %1513 = vmatpush.msra.mxu0 0.0
    %1514 = vmatpush.msra.mxu0 0.0
    %1515 = vmatpush.msra.mxu0 0.0
    %1516 = vmatpush.msra.mxu0 0.0
    %1517 = vmatpush.msra.mxu0 0.0
    %1518 = vmatpush.msra.mxu0 0.0
    %v1519 = vand.u32 %v1181, 4294901760
    %v1520 = vsub.f32 %v1181, %v1519
    %v1521 = vand.u32 %v1520, 4294901760
    %v1522 = vsub.f32 %v1520, %v1521
    %v1523 = vand.u32 %v1522, 4294901760
    %1524 = vmatpush.msra.mxu0 %v1523
    %v1525 = vand.u32 %v1172, 4294901760
    %1526 = vmatmul.f32.gmra.mxu0 %v1525
    %v1527 = vpop.f32.mrf.mxu0
    %v1528 = vadd.f32 %v1502, %v1527
    %1529 = vdwg.mxu0
    %1530 = vmatpush.msra.mxu0 0.0
    %1531 = vmatpush.msra.mxu0 0.0
    %1532 = vmatpush.msra.mxu0 0.0
    %1533 = vmatpush.msra.mxu0 0.0
    %1534 = vmatpush.msra.mxu0 0.0
    %1535 = vmatpush.msra.mxu0 0.0
    %1536 = vmatpush.msra.mxu0 0.0
    %1537 = vmatpush.msra.mxu0 0.0
    %1538 = vmatpush.msra.mxu0 0.0
    %1539 = vmatpush.msra.mxu0 0.0
    %1540 = vmatpush.msra.mxu0 0.0
    %1541 = vmatpush.msra.mxu0 0.0
    %1542 = vmatpush.msra.mxu0 0.0
    %1543 = vmatpush.msra.mxu0 0.0
    %1544 = vmatpush.msra.mxu0 0.0
    %v1545 = vand.u32 %v1181, 4294901760
    %v1546 = vsub.f32 %v1181, %v1545
    %1547 = vmatpush.msra.mxu0 %v1546
    %v1548 = vand.u32 %v1172, 4294901760
    %v1549 = vsub.f32 %v1172, %v1548
    %1550 = vmatmul.f32.gmra.mxu0 %v1549
    %v1551 = vpop.f32.mrf.mxu0
    %v1552 = vadd.f32 %v1528, %v1551
    %1553 = vdwg.mxu0
    %1554 = vmatpush.msra.mxu0 0.0
    %1555 = vmatpush.msra.mxu0 0.0
    %1556 = vmatpush.msra.mxu0 0.0
    %1557 = vmatpush.msra.mxu0 0.0
    %1558 = vmatpush.msra.mxu0 0.0
    %1559 = vmatpush.msra.mxu0 0.0
    %1560 = vmatpush.msra.mxu0 0.0
    %1561 = vmatpush.msra.mxu0 0.0
    %1562 = vmatpush.msra.mxu0 0.0
    %1563 = vmatpush.msra.mxu0 0.0
    %1564 = vmatpush.msra.mxu0 0.0
    %1565 = vmatpush.msra.mxu0 0.0
    %1566 = vmatpush.msra.mxu0 0.0
    %1567 = vmatpush.msra.mxu0 0.0
    %1568 = vmatpush.msra.mxu0 0.0
    %v1569 = vand.u32 %v1181, 4294901760
    %1570 = vmatpush.msra.mxu0 %v1569
    %v1571 = vand.u32 %v1172, 4294901760
    %v1572 = vsub.f32 %v1172, %v1571
    %v1573 = vand.u32 %v1572, 4294901760
    %1574 = vmatmul.f32.gmra.mxu0 %v1573
    %v1575 = vpop.f32.mrf.mxu0
    %v1576 = vadd.f32 %v1552, %v1575
    %1577 = vdwg.mxu0
    %1578 = vmatpush.msra.mxu0 0.0
    %1579 = vmatpush.msra.mxu0 0.0
    %1580 = vmatpush.msra.mxu0 0.0
    %1581 = vmatpush.msra.mxu0 0.0
    %1582 = vmatpush.msra.mxu0 0.0
    %1583 = vmatpush.msra.mxu0 0.0
    %1584 = vmatpush.msra.mxu0 0.0
    %1585 = vmatpush.msra.mxu0 0.0
    %1586 = vmatpush.msra.mxu0 0.0
    %1587 = vmatpush.msra.mxu0 0.0
    %1588 = vmatpush.msra.mxu0 0.0
    %1589 = vmatpush.msra.mxu0 0.0
    %1590 = vmatpush.msra.mxu0 0.0
    %1591 = vmatpush.msra.mxu0 0.0
    %1592 = vmatpush.msra.mxu0 0.0
    %v1593 = vand.u32 %v1181, 4294901760
    %v1594 = vsub.f32 %v1181, %v1593
    %v1595 = vand.u32 %v1594, 4294901760
    %1596 = vmatpush.msra.mxu0 %v1595
    %v1597 = vand.u32 %v1172, 4294901760
    %1598 = vmatmul.f32.gmra.mxu0 %v1597
    %v1599 = vpop.f32.mrf.mxu0
    %v1600 = vadd.f32 %v1576, %v1599
    %1601 = vdwg.mxu0
    %1602 = vmatpush.msra.mxu0 0.0
    %1603 = vmatpush.msra.mxu0 0.0
    %1604 = vmatpush.msra.mxu0 0.0
    %1605 = vmatpush.msra.mxu0 0.0
    %1606 = vmatpush.msra.mxu0 0.0
    %1607 = vmatpush.msra.mxu0 0.0
    %1608 = vmatpush.msra.mxu0 0.0
    %1609 = vmatpush.msra.mxu0 0.0
    %1610 = vmatpush.msra.mxu0 0.0
    %1611 = vmatpush.msra.mxu0 0.0
    %1612 = vmatpush.msra.mxu0 0.0
    %1613 = vmatpush.msra.mxu0 0.0
    %1614 = vmatpush.msra.mxu0 0.0
    %1615 = vmatpush.msra.mxu0 0.0
    %1616 = vmatpush.msra.mxu0 0.0
    %v1617 = vand.u32 %v1181, 4294901760
    %1618 = vmatpush.msra.mxu0 %v1617
    %v1619 = vand.u32 %v1172, 4294901760
    %1620 = vmatmul.f32.gmra.mxu0 %v1619
    %v1621 = vpop.f32.mrf.mxu0
    %v1622 = vadd.f32 %v1600, %v1621
    %1623 = vdwg.mxu0
    %1624 = vmatpush.msra.mxu0 0.0
    %1625 = vmatpush.msra.mxu0 0.0
    %1626 = vmatpush.msra.mxu0 0.0
    %1627 = vmatpush.msra.mxu0 0.0
    %1628 = vmatpush.msra.mxu0 0.0
    %1629 = vmatpush.msra.mxu0 0.0
    %1630 = vmatpush.msra.mxu0 0.0
    %1631 = vmatpush.msra.mxu0 0.0
    %1632 = vmatpush.msra.mxu0 0.0
    %1633 = vmatpush.msra.mxu0 0.0
    %1634 = vmatpush.msra.mxu0 0.0
    %1635 = vmatpush.msra.mxu0 0.0
    %1636 = vmatpush.msra.mxu0 0.0
    %1637 = vmatpush.msra.mxu0 0.0
    %1638 = vmatpush.msra.mxu0 0.0
    %v1639 = vand.u32 %v1184, 4294901760
    %1640 = vmatpush.msra.mxu0 %v1639
    %v1641 = vand.u32 %v1172, 4294901760
    %v1642 = vsub.f32 %v1172, %v1641
    %v1643 = vand.u32 %v1642, 4294901760
    %v1644 = vsub.f32 %v1642, %v1643
    %v1645 = vand.u32 %v1644, 4294901760
    %1646 = vmatmul.f32.gmra.mxu0 %v1645
    %v1647 = vpop.f32.mrf.mxu0
    %v1648 = vadd.f32 0.0, %v1647
    %1649 = vdwg.mxu0
    %1650 = vmatpush.msra.mxu0 0.0
    %1651 = vmatpush.msra.mxu0 0.0
    %1652 = vmatpush.msra.mxu0 0.0
    %1653 = vmatpush.msra.mxu0 0.0
    %1654 = vmatpush.msra.mxu0 0.0
    %1655 = vmatpush.msra.mxu0 0.0
    %1656 = vmatpush.msra.mxu0 0.0
    %1657 = vmatpush.msra.mxu0 0.0
    %1658 = vmatpush.msra.mxu0 0.0
    %1659 = vmatpush.msra.mxu0 0.0
    %1660 = vmatpush.msra.mxu0 0.0
    %1661 = vmatpush.msra.mxu0 0.0
    %1662 = vmatpush.msra.mxu0 0.0
    %1663 = vmatpush.msra.mxu0 0.0
    %1664 = vmatpush.msra.mxu0 0.0
    %v1665 = vand.u32 %v1184, 4294901760
    %v1666 = vsub.f32 %v1184, %v1665
    %v1667 = vand.u32 %v1666, 4294901760
    %v1668 = vsub.f32 %v1666, %v1667
    %v1669 = vand.u32 %v1668, 4294901760
    %1670 = vmatpush.msra.mxu0 %v1669
    %v1671 = vand.u32 %v1172, 4294901760
    %1672 = vmatmul.f32.gmra.mxu0 %v1671
    %v1673 = vpop.f32.mrf.mxu0
    %v1674 = vadd.f32 %v1648, %v1673
    %1675 = vdwg.mxu0
    %1676 = vmatpush.msra.mxu0 0.0
    %1677 = vmatpush.msra.mxu0 0.0
    %1678 = vmatpush.msra.mxu0 0.0
    %1679 = vmatpush.msra.mxu0 0.0
    %1680 = vmatpush.msra.mxu0 0.0
    %1681 = vmatpush.msra.mxu0 0.0
    %1682 = vmatpush.msra.mxu0 0.0
    %1683 = vmatpush.msra.mxu0 0.0
    %1684 = vmatpush.msra.mxu0 0.0
    %1685 = vmatpush.msra.mxu0 0.0
    %1686 = vmatpush.msra.mxu0 0.0
    %1687 = vmatpush.msra.mxu0 0.0
    %1688 = vmatpush.msra.mxu0 0.0
    %1689 = vmatpush.msra.mxu0 0.0
    %1690 = vmatpush.msra.mxu0 0.0
    %v1691 = vand.u32 %v1184, 4294901760
    %v1692 = vsub.f32 %v1184, %v1691
    %1693 = vmatpush.msra.mxu0 %v1692
    %v1694 = vand.u32 %v1172, 4294901760
    %v1695 = vsub.f32 %v1172, %v1694
    %1696 = vmatmul.f32.gmra.mxu0 %v1695
    %v1697 = vpop.f32.mrf.mxu0
    %v1698 = vadd.f32 %v1674, %v1697
    %1699 = vdwg.mxu0
    %1700 = vmatpush.msra.mxu0 0.0
    %1701 = vmatpush.msra.mxu0 0.0
    %1702 = vmatpush.msra.mxu0 0.0
    %1703 = vmatpush.msra.mxu0 0.0
    %1704 = vmatpush.msra.mxu0 0.0
    %1705 = vmatpush.msra.mxu0 0.0
    %1706 = vmatpush.msra.mxu0 0.0
    %1707 = vmatpush.msra.mxu0 0.0
    %1708 = vmatpush.msra.mxu0 0.0
    %1709 = vmatpush.msra.mxu0 0.0
    %1710 = vmatpush.msra.mxu0 0.0
    %1711 = vmatpush.msra.mxu0 0.0
    %1712 = vmatpush.msra.mxu0 0.0
    %1713 = vmatpush.msra.mxu0 0.0
    %1714 = vmatpush.msra.mxu0 0.0
    %v1715 = vand.u32 %v1184, 4294901760
    %1716 = vmatpush.msra.mxu0 %v1715
    %v1717 = vand.u32 %v1172, 4294901760
    %v1718 = vsub.f32 %v1172, %v1717
    %v1719 = vand.u32 %v1718, 4294901760
    %1720 = vmatmul.f32.gmra.mxu0 %v1719
    %v1721 = vpop.f32.mrf.mxu0
    %v1722 = vadd.f32 %v1698, %v1721
    %1723 = vdwg.mxu0
    %1724 = vmatpush.msra.mxu0 0.0
    %1725 = vmatpush.msra.mxu0 0.0
    %1726 = vmatpush.msra.mxu0 0.0
    %1727 = vmatpush.msra.mxu0 0.0
    %1728 = vmatpush.msra.mxu0 0.0
    %1729 = vmatpush.msra.mxu0 0.0
    %1730 = vmatpush.msra.mxu0 0.0
    %1731 = vmatpush.msra.mxu0 0.0
    %1732 = vmatpush.msra.mxu0 0.0
    %1733 = vmatpush.msra.mxu0 0.0
    %1734 = vmatpush.msra.mxu0 0.0
    %1735 = vmatpush.msra.mxu0 0.0
    %1736 = vmatpush.msra.mxu0 0.0
    %1737 = vmatpush.msra.mxu0 0.0
    %1738 = vmatpush.msra.mxu0 0.0
    %v1739 = vand.u32 %v1184, 4294901760
    %v1740 = vsub.f32 %v1184, %v1739
    %v1741 = vand.u32 %v1740, 4294901760
    %1742 = vmatpush.msra.mxu0 %v1741
    %v1743 = vand.u32 %v1172, 4294901760
    %1744 = vmatmul.f32.gmra.mxu0 %v1743
    %v1745 = vpop.f32.mrf.mxu0
    %v1746 = vadd.f32 %v1722, %v1745
    %1747 = vdwg.mxu0
    %1748 = vmatpush.msra.mxu0 0.0
    %1749 = vmatpush.msra.mxu0 0.0
    %1750 = vmatpush.msra.mxu0 0.0
    %1751 = vmatpush.msra.mxu0 0.0
    %1752 = vmatpush.msra.mxu0 0.0
    %1753 = vmatpush.msra.mxu0 0.0
    %1754 = vmatpush.msra.mxu0 0.0
    %1755 = vmatpush.msra.mxu0 0.0
    %1756 = vmatpush.msra.mxu0 0.0
    %1757 = vmatpush.msra.mxu0 0.0
    %1758 = vmatpush.msra.mxu0 0.0
    %1759 = vmatpush.msra.mxu0 0.0
    %1760 = vmatpush.msra.mxu0 0.0
    %1761 = vmatpush.msra.mxu0 0.0
    %1762 = vmatpush.msra.mxu0 0.0
    %v1763 = vand.u32 %v1184, 4294901760
    %1764 = vmatpush.msra.mxu0 %v1763
    %v1765 = vand.u32 %v1172, 4294901760
    %1766 = vmatmul.f32.gmra.mxu0 %v1765
    %v1767 = vpop.f32.mrf.mxu0
    %v1768 = vadd.f32 %v1746, %v1767
    %1769 = vdwg.mxu0
    %v1770 = vld [vmem:[%s8] sm:$0xf]
    %v1771 = vld [vmem:[%s9] sm:$0xf]
    %vm1772 = vcmask 1043456
    %v1773 = vsel %vm1772, %v1330, 0.0
    %v1774 = vsel %vm1772, %v1476, 0.0
    %v1775 = vadd.f32 %v1773, %v1774
    %v1776 = vsel %vm1772, %v1622, 0.0
    %v1777 = vadd.f32 %v1775, %v1776
    %v1778 = vsel %vm1772, %v1768, 0.0
    %v1779 = vadd.f32 %v1777, %v1778
    %1780 = vadd.xlane.f32.xlu0 %v1779
    %v1781 = vpop.xlane.xlu0 %1780
    %v1782 = vmul.f32 %v1781, %v664
    %v1783 = vsub.f32 %v1330, %v1782
    %v1784 = vsub.f32 %v1476, %v1782
    %v1785 = vsub.f32 %v1622, %v1782
    %v1786 = vsub.f32 %v1768, %v1782
    %v1787 = vmul.f32 %v1783, %v1783
    %v1788 = vmul.f32 %v1784, %v1784
    %v1789 = vmul.f32 %v1785, %v1785
    %v1790 = vmul.f32 %v1786, %v1786
    %v1791 = vsel %vm1772, %v1787, 0.0
    %v1792 = vsel %vm1772, %v1788, 0.0
    %v1793 = vadd.f32 %v1791, %v1792
    %v1794 = vsel %vm1772, %v1789, 0.0
    %v1795 = vadd.f32 %v1793, %v1794
    %v1796 = vsel %vm1772, %v1790, 0.0
    %v1797 = vadd.f32 %v1795, %v1796
    %1798 = vadd.xlane.f32.xlu0 %v1797
    %v1799 = vpop.xlane.xlu0 %1798
    %v1800 = vmul.f32 %v1799, %v664
    %v1801 = vadd.f32 %v1800, 1e-05
    %v1802 = vrsqrt.pop %v1801
    %v1803 = vmul.f32 %v1802, %v1801
    %v1804 = vmul.f32 %v1803, %v1802
    %v1805 = vmul.f32 0.5, %v1804
    %v1806 = vsub.f32 1.5, %v1805
    %v1807 = vmul.f32 %v1802, %v1806
    %vm1808 = vweird.f32 %v1801
    %vm1809 = vweird.f32 %v1802
    %vm1810 = vmor %vm1808, %vm1809
    %v1811 = vsel %vm1810, %v1802, %v1807
    %v1812 = vmul.f32 %v1770, %v1811
    %v1813 = vmul.f32 %v1782, %v1812
    %v1814 = vsub.f32 %v1771, %v1813
    %1816 = vset.pattern.permute.xlu0 0
    %1817 = vperm.xlu0 %1816, %v1812
    %v1818 = vpop.permute.xlu0 %1817
    %v1820 = vmul.f32 %v1330, %v1818
    %v1821 = vmul.f32 %v1476, %v1818
    %v1822 = vmul.f32 %v1622, %v1818
    %v1823 = vmul.f32 %v1768, %v1818
    %1825 = vset.pattern.permute.xlu0 0
    %1826 = vperm.xlu0 %1825, %v1814
    %v1827 = vpop.permute.xlu0 %1826
    %v1829 = vadd.f32 %v1820, %v1827
    %v1830 = vadd.f32 %v1821, %v1827
    %v1831 = vadd.f32 %v1822, %v1827
    %v1832 = vadd.f32 %v1823, %v1827
    %v1835 = vrot.slane %v52, 1
    %v1836 = vrot.slane %v53, 1
    %v1839 = vrot.slane %v52, 2
    %v1840 = vrot.slane %v53, 2
    %v1843 = vrot.slane %v52, 3
    %v1844 = vrot.slane %v53, 3
    %vm1847 = vcmask 1040384
    %v1848 = vsel %vm1847, %v52, %v1835
    %v1849 = vsel %vm1847, %v53, %v1836
    %v1850 = vsel %vm648, %v1848, %v1839
    %v1851 = vsel %vm648, %v1849, %v1840
    %vm1852 = vcmask 1042432
    %v1853 = vsel %vm1852, %v1850, %v1843
    %v1854 = vsel %vm1852, %v1851, %v1844
    %v1857 = vrot.slane %v1829, 4
    %v1858 = vrot.slane %v1830, 4
    %v1861 = vsel %vm1772, %v1853, %v1857
    %v1862 = vsel %vm1772, %v1854, %v1858
    %1863 = vst [vmem:[#allocation5] sm:$0xff] %v1861
    %1864 = vst [vmem:[#allocation5 + $0x8] sm:$0xff] %v1862
    %v1867 = vrot.slane %v55, 1
    %v1868 = vrot.slane %v56, 1
    %v1871 = vrot.slane %v55, 2
    %v1872 = vrot.slane %v56, 2
    %v1875 = vrot.slane %v55, 3
    %v1876 = vrot.slane %v56, 3
    %v1879 = vsel %vm1847, %v55, %v1867
    %v1880 = vsel %vm1847, %v56, %v1868
    %v1881 = vsel %vm648, %v1879, %v1871
    %v1882 = vsel %vm648, %v1880, %v1872
    %v1883 = vsel %vm1852, %v1881, %v1875
    %v1884 = vsel %vm1852, %v1882, %v1876
    %v1887 = vrot.slane %v1831, 4
    %v1888 = vrot.slane %v1832, 4
    %v1891 = vsel %vm1772, %v1883, %v1887
    %v1892 = vsel %vm1772, %v1884, %v1888
    %s1893 = scalar_lea.vmem [#allocation5], 16
    %1894 = vst [vmem:[%s1893] sm:$0xff] %v1891
    %1895 = vst [vmem:[%s1893 + $0x8] sm:$0xff] %v1892
    // Predicated region
    $region46: #{tpu_custom_call.1} parent=1 // pred_check
      _
    $region47: #{tpu_custom_call.1} parent=1 // pred_check_branch
      %1897 = sbr.rel (0) target = $region49
    $region48: #{tpu_custom_call.1} parent=1 // pred_region
      %1899 = vsyncadd [#allocation4], 0
      %s1900 = sshll.u32 [#allocation5], 4
      %s1901 = int_to_ptr.vmem [resolvable:$true] %s1900
      %s1902 = sshll.u32 %s10, 4
      %s1903 = int_to_ptr.hbm [resolvable:$true] %s1902
      %1908 = dma.vmem_to_hbm [thread:$0]  %s1901, 512, %s1903, [#allocation4], 256, 256, 16
    $region49: #{tpu_custom_call.1} parent=1 // pred_fallthru
      _
    // Predicated region
    $region50: #{tpu_custom_call.1} parent=1 // pred_check
      _
    $region51: #{tpu_custom_call.1} parent=1 // pred_check_branch
      %1910 = sbr.rel (0) target = $region53
    $region52: #{tpu_custom_call.1} parent=1 // pred_region
      %1912 = dma.done [#allocation4], 512
    $region53: #{tpu_custom_call.1} parent=1 // pred_fallthru
      _
    %1913 = vsyncpa [#allocation3], 1
    %1914 = vsyncpa [#allocation4], 1

</llo_original>
